<compile_context>
chip_gen: v7x
topology: tpu7x:2x2x1
jax: 0.10.0
libtpu: 0.0.40
codegen_flags: <defaults>
</compile_context>

<pallas_src>
import functools

import jax
import jax.numpy as jnp
import numpy as np
from jax import lax
from jax.experimental import pallas as pl
from jax.experimental.pallas import tpu as pltpu


MXU_DTYPE = jnp.bfloat16      # MXU operand + inter-stage activation dtype


def _vmem_capacity_bytes():
    try:
        return int(pltpu.get_tpu_info().vmem_capacity_bytes)
    except Exception:
        return 64 * 1024 * 1024      # v7x physical VMEM (smallest generation)


# ----------------------------------------------------------------------------
# Pallas kernels:  out(Cout, tm) = W(Cout, K) @ patches(K, tm) + bias
#                  -> PReLU -> (optional fused +/- residual) -> cast & store
# ----------------------------------------------------------------------------
def _gemm_prelu_kernel(alpha_ref, w_ref, p_ref, b_ref, o_ref):
    acc = jnp.dot(w_ref[...], p_ref[...], preferred_element_type=jnp.float32)
    acc = acc + b_ref[...]                        # (Cout, tm) + (Cout, 1)
    a = alpha_ref[0]                              # scalar PReLU slope (SMEM)
    o_ref[...] = jnp.where(acc >= 0.0, acc, a * acc).astype(o_ref.dtype)


def _make_gemm_prelu_res_kernel(subtract: bool):
    def kernel(alpha_ref, w_ref, p_ref, b_ref, r_ref, o_ref):
        acc = jnp.dot(w_ref[...], p_ref[...], preferred_element_type=jnp.float32)
        acc = acc + b_ref[...]
        a = alpha_ref[0]
        y = jnp.where(acc >= 0.0, acc, a * acc)
        r = r_ref[...].astype(jnp.float32)        # residual streamed in bf16
        o_ref[...] = ((y - r) if subtract else (y + r)).astype(o_ref.dtype)
    return kernel


def _pick_tm(M, K, cout, n_res, out_bytes):
    """Lane-tile size: VMEM-budget aware (double-buffered patches / residual /
    output tiles + resident weight) and pipeline aware (>=2/4/8 grid steps,
    even counts preferred so both v7x TensorCores get work)."""
    cap = _vmem_capacity_bytes()
    budget = min(int(cap * 0.6), 48 * 1024 * 1024)
    per_col = 2 * (2 * K) + 2 * cout * out_bytes + n_res * 2 * cout * 2
    fixed = 2 * cout * K + 4 * cout + (1 << 20)       # weight + bias + slack
    tm_cap = (budget - fixed) // max(per_col, 1)
    tm_cap = int(max(256, min(2048, (tm_cap // 256) * 256)))
    if M <= 256:
        return int(M)
    want_steps = 2 if M < 1024 else (4 if M < 4096 else 8)
    tm = tm_cap
    while tm > 256 and -(-M // tm) < want_steps:
        tm -= 256
    return tm


def gemm_prelu(w_mat, patches, bias, alpha, residual=None, subtract=False,
               out_dtype=MXU_DTYPE):
    """out = PReLU(w_mat @ patches + bias[:, None]) (optionally +/- residual),
    stored in `out_dtype` (bf16 for intermediates, f32 for the block output)."""
    Cout, K = w_mat.shape
    K2, M = patches.shape
    assert K == K2, (K, K2)
    assert alpha.size == 1, "only nn.PReLU() with a single shared slope is supported"

    out_bytes = 4 if out_dtype == jnp.float32 else 2
    n_res = 0 if residual is None else 1
    tm = _pick_tm(M, K, Cout, n_res, out_bytes)
    n_tiles = pl.cdiv(M, tm)      # ragged edge block (if any) is masked on store

    w_c = w_mat.astype(MXU_DTYPE)
    p_c = patches.astype(MXU_DTYPE)               # no-op when already bf16
    b_c = bias.reshape(Cout, 1).astype(jnp.float32)

    in_specs = [
        pl.BlockSpec(memory_space=pltpu.MemorySpace.SMEM),   # alpha (scalar)
        pl.BlockSpec((Cout, K), lambda i: (0, 0)),           # weight (resident)
        pl.BlockSpec((K, tm), lambda i: (0, i)),             # patches tile
        pl.BlockSpec((Cout, 1), lambda i: (0, 0)),           # bias (resident)
    ]
    args = [alpha.astype(jnp.float32), w_c, p_c, b_c]
    if residual is None:
        kernel = _gemm_prelu_kernel
    else:
        kernel = _make_gemm_prelu_res_kernel(bool(subtract))
        in_specs.append(pl.BlockSpec((Cout, tm), lambda i: (0, i)))
        args.append(residual.astype(MXU_DTYPE))

    # Explicit scoped-VMEM limit: double-buffered tiles + resident weight/bias.
    est = (2 * K * tm * 2 + 2 * Cout * tm * out_bytes + n_res * 2 * Cout * tm * 2
           + Cout * K * 2 + Cout * 4)
    cap = _vmem_capacity_bytes()
    vmem_limit = int(min(cap * 9 // 10, max(32 * 1024 * 1024, 2 * est)))

    return pl.pallas_call(
        kernel,
        out_shape=jax.ShapeDtypeStruct((Cout, M), out_dtype),
        grid=(n_tiles,),
        in_specs=in_specs,
        out_specs=pl.BlockSpec((Cout, tm), lambda i: (0, i)),
        compiler_params=pltpu.CompilerParams(
            dimension_semantics=("parallel",),
            vmem_limit_bytes=vmem_limit),
    )(*args)
    # TODO(synk): for tiny C (the C=4 test case) the deep/conv2 output tiles
    # use only 4 of 8/16 sublanes; folding a factor of N into Cout would pack
    # them (non-issue at realistic C=64).


# ----------------------------------------------------------------------------
# Plain-JAX glue (all inside one jit): channel-first im2col producing (K, M)
# bf16 patches, phase decomposition of ConvTranspose2d, phase-domain Conv2d
# weight rewrite, and the single final phase -> NCHW reshuffle.
# ----------------------------------------------------------------------------
def _im2col_t(x_cnhw, k, s, pad_lo, pad_hi):
    """(C, N, H, W) -> patches (k*k*C, N*Ho*Wo); K ordered (kh, kw, c),
    M ordered (n, ho, wo).  Runs in XLA (bf16) feeding the Pallas GEMM."""
    # TODO(synk): fusing this window extraction into the Pallas kernel (halo
    # row DMA + per-tap in-register shifts) would remove the remaining k*k-fold
    # HBM expansion of the activation stream.
    C, N, H, W = x_cnhw.shape
    xp = jnp.pad(x_cnhw, ((0, 0), (0, 0), (pad_lo, pad_hi), (pad_lo, pad_hi)))
    Ho = (H + pad_lo + pad_hi - k) // s + 1
    Wo = (W + pad_lo + pad_hi - k) // s + 1
    cols = []
    for kh in range(k):
        for kw in range(k):
            cols.append(xp[:, :, kh:kh + (Ho - 1) * s + 1:s,
                              kw:kw + (Wo - 1) * s + 1:s])
    p = jnp.stack(cols, axis=0)                       # (k*k, C, N, Ho, Wo)
    return p.reshape(k * k * C, N * Ho * Wo), (N, Ho, Wo)


def _conv_weight_mat(w_oihw):
    """Conv2d weight (Cout, Cin, k, k) -> (Cout, k*k*Cin); K ordered (kh,kw,ci)."""
    Cout, Cin, k, _ = w_oihw.shape
    return jnp.transpose(w_oihw, (0, 2, 3, 1)).reshape(Cout, k * k * Cin)


def _convT_phase_weight(w_t, stride, padding):
    """ConvTranspose2d weight (Cin, Cout, k, k) -> weight of the equivalent
    phase-stacked stride-1 conv: (s*s*Cout, T*T*Cin), output channels ordered
    (rh, rw, co), K ordered (th, tw, ci).  Returns (Wmat, A, T): the stride-1
    conv uses a TxT window on the input padded by A (low) / T-1-A (high)."""
    Cin, Cout, k, _ = w_t.shape
    s, p = stride, padding
    ds = [(r + p - kh) // s for r in range(s) for kh in range(k)
          if (r + p - kh) % s == 0]
    A = -min(ds)
    T = max(ds) + A + 1
    kh_idx = np.zeros((s, T), np.int32)
    kh_ok = np.zeros((s, T), np.float32)
    for r in range(s):
        for t in range(T):
            kh = r + p - s * (t - A)
            if 0 <= kh < k:
                kh_idx[r, t] = kh
                kh_ok[r, t] = 1.0
    # gather -> (Cin, Cout, rh, th, rw, tw); zero the taps that fall outside k
    wg = w_t[:, :, kh_idx[:, :, None, None], kh_idx[None, None, :, :]]
    wg = wg * jnp.asarray(kh_ok[:, :, None, None] * kh_ok[None, None, :, :])
    wg = jnp.transpose(wg, (2, 4, 1, 3, 5, 0))        # (rh, rw, co, th, tw, ci)
    return wg.reshape(s * s * Cout, T * T * Cin), A, T


def _conv_weight_phase_input(w_oihw, stride, padding):
    """Conv2d weight (Cout, Cin, k, k) of a stride-s conv, rewritten as the
    weight of the equivalent stride-1 conv that consumes the (s*s*Cin)-channel
    PHASE tensor directly (so conv1 never has to be depth-to-space'd):
      out[co,n,ho,wo] = sum_{dh,dw,rh,rw,ci} Wp[co,(dh,dw,rh,rw,ci)]
                          * phase[(rh,rw,ci), n, ho+dh, wo+dw],  kh = s*dh+rh+p.
    Returns (Wmat, pad_lo, pad_hi, D): the stride-1 conv uses a DxD window on
    the phase tensor zero-padded by pad_lo (low) / pad_hi (high)."""
    Cout, Cin, k, _ = w_oihw.shape
    s, p = stride, padding
    dmin = min((kh - p) // s for kh in range(k))
    dmax = max((kh - p) // s for kh in range(k))
    D = dmax - dmin + 1
    kh_idx = np.zeros((D, s), np.int32)
    kh_ok = np.zeros((D, s), np.float32)
    for di in range(D):
        for r in range(s):
            kh = s * (dmin + di) + r + p
            if 0 <= kh < k:
                kh_idx[di, r] = kh
                kh_ok[di, r] = 1.0
    # gather -> (Cout, Cin, dh, rh, dw, rw); zero taps that fall outside [0, k)
    wg = w_oihw[:, :, kh_idx[:, :, None, None], kh_idx[None, None, :, :]]
    wg = wg * jnp.asarray(kh_ok[:, :, None, None] * kh_ok[None, None, :, :])
    # TODO(synk): for large-stride DBPN configs (k=8,s=4 / k=12,s=8) some
    # (dh, rh) taps are structurally zero; pruning them would shrink K.
    wg = jnp.transpose(wg, (0, 2, 4, 3, 5, 1))        # (co, dh, dw, rh, rw, ci)
    return wg.reshape(Cout, D * D * s * s * Cin), -dmin, dmax, D


def _phase_to_nchw(y_pm, s, Cout, N, H, W):
    """(s*s*Cout, N*H*W) phase-stacked -> (N, Cout, s*H, s*W), one transpose."""
    y = y_pm.reshape(s, s, Cout, N, H, W)
    y = jnp.transpose(y, (3, 2, 4, 0, 5, 1))          # (N, Cout, H, s, W, s)
    return y.reshape(N, Cout, H * s, W * s)


# ----------------------------------------------------------------------------
# DeepUpProjectionBlock forward (Pallas-backed).
# ----------------------------------------------------------------------------
@functools.partial(jax.jit, static_argnums=(2, 3, 4))
def deep_up_projection_block(x_nchw, params, kernel_size, stride, padding):
    k, s, p = kernel_size, stride, padding
    # Sub-pixel / phase decomposition assumes the up-projection output is
    # exactly s*H, true for all DBPN configs (6/2/2, 8/4/2, 12/8/2).
    # TODO(synk): general (k, s, p) with k - s - 2p != 0 needs output cropping.
    assert k - s - 2 * p == 0, "unsupported (kernel, stride, padding) geometry"

    N, Cin_tot, H, W = x_nchw.shape
    C = params["w_dc"].shape[0]
    M = N * H * W

    # channel-first bf16 input; the 1x1 deep_conv im2col is just this reshape
    x_cf = jnp.transpose(x_nchw, (1, 0, 2, 3)).astype(MXU_DTYPE)
    p0 = x_cf.reshape(Cin_tot, M)
    deep = gemm_prelu(_conv_weight_mat(params["w_dc"]), p0,
                      params["b_dc"], params["a_dc"])            # (C, M) bf16

    # conv1: ConvTranspose2d + PReLU as a phase-stacked stride-1 conv; the
    # result is KEPT in phase layout (never depth-to-space'd).
    w1_mat, A1, T1 = _convT_phase_weight(params["w1"], s, p)
    p1, _ = _im2col_t(deep.reshape(C, N, H, W), T1, 1, A1, T1 - 1 - A1)
    conv1_ph = gemm_prelu(w1_mat, p1, jnp.tile(params["b1"], s * s),
                          params["a1"])                          # (s*s*C, M) bf16

    # conv2: Conv2d(stride=s) + PReLU computed directly on the phase tensor
    # (stride-1 DxD window), fused "- deep_conv".
    w2p_mat, plo2, phi2, D2 = _conv_weight_phase_input(params["w2"], s, p)
    p2, (_, Ho2, Wo2) = _im2col_t(conv1_ph.reshape(s * s * C, N, H, W),
                                  D2, 1, plo2, phi2)
    assert (Ho2, Wo2) == (H, W), (Ho2, Wo2, H, W)
    conv2 = gemm_prelu(w2p_mat, p2, params["b2"], params["a2"],
                       residual=deep, subtract=True)             # (C, M) bf16

    # conv3: ConvTranspose2d + PReLU, fused "+ conv1" (added in phase layout);
    # f32 output for the block boundary.
    w3_mat, A3, T3 = _convT_phase_weight(params["w3"], s, p)
    p3, _ = _im2col_t(conv2.reshape(C, N, H, W), T3, 1, A3, T3 - 1 - A3)
    out_ph = gemm_prelu(w3_mat, p3, jnp.tile(params["b3"], s * s),
                        params["a3"], residual=conv1_ph, subtract=False,
                        out_dtype=jnp.float32)                   # (s*s*C, M) f32

    return _phase_to_nchw(out_ph, s, C, N, H, W)                 # NCHW f32


# ----------------------------------------------------------------------------
# Pure-JAX reference (mirrors PyTorch semantics) for validation.
# ----------------------------------------------------------------------------
def reference_forward(x_nchw, params, kernel_size, stride, padding):
    def prelu(v, a):
        return jnp.where(v >= 0, v, a * v)

    def conv(v, w, b, st, pd):
        y = lax.conv_general_dilated(
            v, w, (st, st), [(pd, pd), (pd, pd)],
            dimension_numbers=("NCHW", "OIHW", "NCHW"),
            precision=lax.Precision.HIGHEST)
        return y + b[None, :, None, None]

    def convT(v, wt, b, st, pd, k):
        wc = jnp.transpose(wt[:, :, ::-1, ::-1], (1, 0, 2, 3))
        y = lax.conv_general_dilated(
            v, wc, (1, 1), [(k - 1 - pd,) * 2] * 2, lhs_dilation=(st, st),
            dimension_numbers=("NCHW", "OIHW", "NCHW"),
            precision=lax.Precision.HIGHEST)
        return y + b[None, :, None, None]

    deep = prelu(conv(x_nchw, params["w_dc"], params["b_dc"], 1, 0), params["a_dc"][0])
    c1 = prelu(convT(deep, params["w1"], params["b1"], stride, padding, kernel_size),
               params["a1"][0])
    c2 = prelu(conv(c1, params["w2"], params["b2"], stride, padding), params["a2"][0]) - deep
    c3 = prelu(convT(c2, params["w3"], params["b3"], stride, padding, kernel_size),
               params["a3"][0]) + c1
    return c3


# ----------------------------------------------------------------------------
# Deterministic parameter init (synthetic; mirrors module's init where defined).
# ----------------------------------------------------------------------------
def init_params(key, channels, num_stage, kernel_size):
    ks = jax.random.split(key, 4)
    std = 0.111
    # Conv2d weights: (Cout, Cin, kh, kw), normal(0, 0.111), zero bias.
    w_dc = std * jax.random.normal(ks[0], (channels, channels * num_stage, 1, 1), jnp.float32)
    w2 = std * jax.random.normal(ks[1], (channels, channels, kernel_size, kernel_size), jnp.float32)
    # ConvTranspose2d weights: (Cin, Cout, kh, kw).
    # TODO(synk): PyTorch's default ConvTranspose2d init (kaiming-uniform) isn't
    # reproduced exactly; deterministic normal(0, 0.111) is used instead.
    w1 = std * jax.random.normal(ks[2], (channels, channels, kernel_size, kernel_size), jnp.float32)
    w3 = std * jax.random.normal(ks[3], (channels, channels, kernel_size, kernel_size), jnp.float32)
    zeros_c = jnp.zeros((channels,), jnp.float32)
    a025 = jnp.array([0.25], jnp.float32)  # nn.PReLU() default slope
    return dict(
        w_dc=w_dc, b_dc=zeros_c, a_dc=a025,
        w1=w1, b1=zeros_c, a1=a025,
        w2=w2, b2=zeros_c, a2=a025,
        w3=w3, b3=zeros_c, a3=a025,
    )


if __name__ == "__main__":
    channels, num_stage = 4, 2
    kernel_size, stride, padding = 6, 2, 2   # DBPN 2x up-projection config
    N, H, W = 2, 16, 16

    key = jax.random.PRNGKey(0)
    k_x, k_p = jax.random.split(key)
    x = jax.random.normal(k_x, (N, channels * num_stage, H, W), jnp.float32)
    params = init_params(k_p, channels, num_stage, kernel_size)

    out = deep_up_projection_block(x, params, kernel_size, stride, padding)
    out = jax.block_until_ready(out)

    ref = jax.block_until_ready(
        reference_forward(x, params, kernel_size, stride, padding))

    assert out.shape == (N, channels, H * stride, W * stride), out.shape
    # bf16 MXU operands + bf16 inter-stage activations/residuals (f32
    # accumulation) vs a float32 HIGHEST-precision reference.
    if not np.allclose(np.asarray(out), np.asarray(ref), rtol=3e-2, atol=3e-2):
        raise AssertionError("Pallas result does not match reference")

    print("KERNEL_OK")
</pallas_src>

<mosaic_0001>
module attributes {stable_mosaic.version = 11 : i64} {
  func.func @_gemm_prelu_kernel(%arg0: i32, %arg1: memref<1xf32, #tpu.memory_space<smem>>, %arg2: memref<4x8xbf16, #tpu.memory_space<vmem>>, %arg3: memref<8x256xbf16, #tpu.memory_space<vmem>>, %arg4: memref<4x1xf32, #tpu.memory_space<vmem>>, %arg5: memref<4x256xbf16, #tpu.memory_space<vmem>>) attributes {dimension_semantics = [#tpu.dimension_semantics<parallel>], iteration_bounds = array<i64: 2>, scalar_prefetch = 0 : i64, scratch_operands = 0 : i64, tpu.core_type = #tpu.core_type<tc>, window_params = [{transform_indices = @transform_0, window_bounds = array<i64: 1>}, {pipeline_mode = #tpu.pipeline_mode<synchronous>, transform_indices = @transform_1, window_bounds = array<i64: 4, 8>}, {transform_indices = @transform_2, window_bounds = array<i64: 8, 256>}, {pipeline_mode = #tpu.pipeline_mode<synchronous>, transform_indices = @transform_3, window_bounds = array<i64: 4, 1>}, {transform_indices = @transform_4, window_bounds = array<i64: 4, 256>}]} {
    %c0 = arith.constant 0 : index
    %c0_0 = arith.constant 0 : index
    %0 = vector.load %arg2[%c0, %c0_0] : memref<4x8xbf16, #tpu.memory_space<vmem>>, vector<4x8xbf16>
    %c0_1 = arith.constant 0 : index
    %c0_2 = arith.constant 0 : index
    %1 = vector.load %arg3[%c0_1, %c0_2] : memref<8x256xbf16, #tpu.memory_space<vmem>>, vector<8x256xbf16>
    %cst = arith.constant dense<0.000000e+00> : vector<4x256xf32>
    %2 = tpu.matmul %0, %1, %cst {dimension_numbers = #tpu.dot_dimension_numbers<[1], [0], [0], [1], [0, 0, 1, 1], [], []>} : vector<4x8xbf16>, vector<8x256xbf16>, vector<4x256xf32> -> vector<4x256xf32>
    %c0_3 = arith.constant 0 : index
    %c0_4 = arith.constant 0 : index
    %3 = vector.load %arg4[%c0_3, %c0_4] : memref<4x1xf32, #tpu.memory_space<vmem>>, vector<4x1xf32>
    %4 = vector.broadcast %3 : vector<4x1xf32> to vector<4x256xf32>
    %5 = arith.addf %2, %4 : vector<4x256xf32>
    %c0_5 = arith.constant 0 : index
    %6 = memref.load %arg1[%c0_5] : memref<1xf32, #tpu.memory_space<smem>>
    %cst_6 = arith.constant 0.000000e+00 : f32
    %7 = vector.broadcast %cst_6 : f32 to vector<4x256xf32>
    %8 = arith.cmpf oge, %5, %7 : vector<4x256xf32>
    %9 = vector.broadcast %6 : f32 to vector<4x256xf32>
    %10 = arith.mulf %9, %5 : vector<4x256xf32>
    %11 = arith.select %8, %5, %10 : vector<4x256xi1>, vector<4x256xf32>
    %12 = arith.truncf %11 : vector<4x256xf32> to vector<4x256xbf16>
    %c0_7 = arith.constant 0 : index
    %c0_8 = arith.constant 0 : index
    %13 = vector.load %arg5[%c0_7, %c0_8] : memref<4x256xbf16, #tpu.memory_space<vmem>>, vector<4x256xbf16>
    tpu.vector_store %arg5[%c0_7, %c0_8], %12 {strides = array<i32>} : memref<4x256xbf16, #tpu.memory_space<vmem>>, vector<4x256xbf16>,
    return
  }
  func.func @transform_0(%arg0: i32) -> i32 {
    %c0_i32 = arith.constant 0 : i32
    %c0_i32_0 = arith.constant 0 : i32
    return %c0_i32 : i32
  }
  func.func @transform_1(%arg0: i32) -> (i32, i32) {
    %c0_i32 = arith.constant 0 : i32
    %c0_i32_0 = arith.constant 0 : i32
    %c0_i32_1 = arith.constant 0 : i32
    return %c0_i32, %c0_i32_0 : i32, i32
  }
  func.func @transform_2(%arg0: i32) -> (i32, i32) {
    %c0_i32 = arith.constant 0 : i32
    %c0_i32_0 = arith.constant 0 : i32
    return %c0_i32, %arg0 : i32, i32
  }
  func.func @transform_3(%arg0: i32) -> (i32, i32) {
    %c0_i32 = arith.constant 0 : i32
    %c0_i32_0 = arith.constant 0 : i32
    %c0_i32_1 = arith.constant 0 : i32
    return %c0_i32, %c0_i32_0 : i32, i32
  }
  func.func @transform_4(%arg0: i32) -> (i32, i32) {
    %c0_i32 = arith.constant 0 : i32
    %c0_i32_0 = arith.constant 0 : i32
    return %c0_i32, %arg0 : i32, i32
  }
}

module attributes {stable_mosaic.version = 11 : i64} {
  func.func @_gemm_prelu_kernel(%arg0: i32, %arg1: memref<1xf32, #tpu.memory_space<smem>>, %arg2: memref<16x36xbf16, #tpu.memory_space<vmem>>, %arg3: memref<36x256xbf16, #tpu.memory_space<vmem>>, %arg4: memref<16x1xf32, #tpu.memory_space<vmem>>, %arg5: memref<16x256xbf16, #tpu.memory_space<vmem>>) attributes {dimension_semantics = [#tpu.dimension_semantics<parallel>], iteration_bounds = array<i64: 2>, scalar_prefetch = 0 : i64, scratch_operands = 0 : i64, tpu.core_type = #tpu.core_type<tc>, window_params = [{transform_indices = @transform_0, window_bounds = array<i64: 1>}, {pipeline_mode = #tpu.pipeline_mode<synchronous>, transform_indices = @transform_1, window_bounds = array<i64: 16, 36>}, {transform_indices = @transform_2, window_bounds = array<i64: 36, 256>}, {pipeline_mode = #tpu.pipeline_mode<synchronous>, transform_indices = @transform_3, window_bounds = array<i64: 16, 1>}, {transform_indices = @transform_4, window_bounds = array<i64: 16, 256>}]} {
    %c0 = arith.constant 0 : index
    %c0_0 = arith.constant 0 : index
    %0 = vector.load %arg2[%c0, %c0_0] : memref<16x36xbf16, #tpu.memory_space<vmem>>, vector<16x36xbf16>
    %c0_1 = arith.constant 0 : index
    %c0_2 = arith.constant 0 : index
    %1 = vector.load %arg3[%c0_1, %c0_2] : memref<36x256xbf16, #tpu.memory_space<vmem>>, vector<36x256xbf16>
    %cst = arith.constant dense<0.000000e+00> : vector<16x256xf32>
    %2 = tpu.matmul %0, %1, %cst {dimension_numbers = #tpu.dot_dimension_numbers<[1], [0], [0], [1], [0, 0, 1, 1], [], []>} : vector<16x36xbf16>, vector<36x256xbf16>, vector<16x256xf32> -> vector<16x256xf32>
    %c0_3 = arith.constant 0 : index
    %c0_4 = arith.constant 0 : index
    %3 = vector.load %arg4[%c0_3, %c0_4] : memref<16x1xf32, #tpu.memory_space<vmem>>, vector<16x1xf32>
    %4 = vector.broadcast %3 : vector<16x1xf32> to vector<16x256xf32>
    %5 = arith.addf %2, %4 : vector<16x256xf32>
    %c0_5 = arith.constant 0 : index
    %6 = memref.load %arg1[%c0_5] : memref<1xf32, #tpu.memory_space<smem>>
    %cst_6 = arith.constant 0.000000e+00 : f32
    %7 = vector.broadcast %cst_6 : f32 to vector<16x256xf32>
    %8 = arith.cmpf oge, %5, %7 : vector<16x256xf32>
    %9 = vector.broadcast %6 : f32 to vector<16x256xf32>
    %10 = arith.mulf %9, %5 : vector<16x256xf32>
    %11 = arith.select %8, %5, %10 : vector<16x256xi1>, vector<16x256xf32>
    %12 = arith.truncf %11 : vector<16x256xf32> to vector<16x256xbf16>
    %c0_7 = arith.constant 0 : index
    %c0_8 = arith.constant 0 : index
    %13 = vector.load %arg5[%c0_7, %c0_8] : memref<16x256xbf16, #tpu.memory_space<vmem>>, vector<16x256xbf16>
    tpu.vector_store %arg5[%c0_7, %c0_8], %12 {strides = array<i32>} : memref<16x256xbf16, #tpu.memory_space<vmem>>, vector<16x256xbf16>,
    return
  }
  func.func @transform_0(%arg0: i32) -> i32 {
    %c0_i32 = arith.constant 0 : i32
    %c0_i32_0 = arith.constant 0 : i32
    return %c0_i32 : i32
  }
  func.func @transform_1(%arg0: i32) -> (i32, i32) {
    %c0_i32 = arith.constant 0 : i32
    %c0_i32_0 = arith.constant 0 : i32
    %c0_i32_1 = arith.constant 0 : i32
    return %c0_i32, %c0_i32_0 : i32, i32
  }
  func.func @transform_2(%arg0: i32) -> (i32, i32) {
    %c0_i32 = arith.constant 0 : i32
    %c0_i32_0 = arith.constant 0 : i32
    return %c0_i32, %arg0 : i32, i32
  }
  func.func @transform_3(%arg0: i32) -> (i32, i32) {
    %c0_i32 = arith.constant 0 : i32
    %c0_i32_0 = arith.constant 0 : i32
    %c0_i32_1 = arith.constant 0 : i32
    return %c0_i32, %c0_i32_0 : i32, i32
  }
  func.func @transform_4(%arg0: i32) -> (i32, i32) {
    %c0_i32 = arith.constant 0 : i32
    %c0_i32_0 = arith.constant 0 : i32
    return %c0_i32, %arg0 : i32, i32
  }
}

module attributes {stable_mosaic.version = 11 : i64} {
  func.func @kernel(%arg0: i32, %arg1: memref<1xf32, #tpu.memory_space<smem>>, %arg2: memref<16x36xbf16, #tpu.memory_space<vmem>>, %arg3: memref<36x256xbf16, #tpu.memory_space<vmem>>, %arg4: memref<16x1xf32, #tpu.memory_space<vmem>>, %arg5: memref<16x256xbf16, #tpu.memory_space<vmem>>, %arg6: memref<16x256xf32, #tpu.memory_space<vmem>>) attributes {dimension_semantics = [#tpu.dimension_semantics<parallel>], iteration_bounds = array<i64: 2>, scalar_prefetch = 0 : i64, scratch_operands = 0 : i64, tpu.core_type = #tpu.core_type<tc>, window_params = [{transform_indices = @transform_0, window_bounds = array<i64: 1>}, {pipeline_mode = #tpu.pipeline_mode<synchronous>, transform_indices = @transform_1, window_bounds = array<i64: 16, 36>}, {transform_indices = @transform_2, window_bounds = array<i64: 36, 256>}, {pipeline_mode = #tpu.pipeline_mode<synchronous>, transform_indices = @transform_3, window_bounds = array<i64: 16, 1>}, {transform_indices = @transform_4, window_bounds = array<i64: 16, 256>}, {transform_indices = @transform_5, window_bounds = array<i64: 16, 256>}]} {
    %c0 = arith.constant 0 : index
    %c0_0 = arith.constant 0 : index
    %0 = vector.load %arg2[%c0, %c0_0] : memref<16x36xbf16, #tpu.memory_space<vmem>>, vector<16x36xbf16>
    %c0_1 = arith.constant 0 : index
    %c0_2 = arith.constant 0 : index
    %1 = vector.load %arg3[%c0_1, %c0_2] : memref<36x256xbf16, #tpu.memory_space<vmem>>, vector<36x256xbf16>
    %cst = arith.constant dense<0.000000e+00> : vector<16x256xf32>
    %2 = tpu.matmul %0, %1, %cst {dimension_numbers = #tpu.dot_dimension_numbers<[1], [0], [0], [1], [0, 0, 1, 1], [], []>} : vector<16x36xbf16>, vector<36x256xbf16>, vector<16x256xf32> -> vector<16x256xf32>
    %c0_3 = arith.constant 0 : index
    %c0_4 = arith.constant 0 : index
    %3 = vector.load %arg4[%c0_3, %c0_4] : memref<16x1xf32, #tpu.memory_space<vmem>>, vector<16x1xf32>
    %4 = vector.broadcast %3 : vector<16x1xf32> to vector<16x256xf32>
    %5 = arith.addf %2, %4 : vector<16x256xf32>
    %c0_5 = arith.constant 0 : index
    %6 = memref.load %arg1[%c0_5] : memref<1xf32, #tpu.memory_space<smem>>
    %cst_6 = arith.constant 0.000000e+00 : f32
    %7 = vector.broadcast %cst_6 : f32 to vector<16x256xf32>
    %8 = arith.cmpf oge, %5, %7 : vector<16x256xf32>
    %9 = vector.broadcast %6 : f32 to vector<16x256xf32>
    %10 = arith.mulf %9, %5 : vector<16x256xf32>
    %11 = arith.select %8, %5, %10 : vector<16x256xi1>, vector<16x256xf32>
    %c0_7 = arith.constant 0 : index
    %c0_8 = arith.constant 0 : index
    %12 = vector.load %arg5[%c0_7, %c0_8] : memref<16x256xbf16, #tpu.memory_space<vmem>>, vector<16x256xbf16>
    %13 = arith.extf %12 : vector<16x256xbf16> to vector<16x256xf32>
    %14 = arith.addf %11, %13 : vector<16x256xf32>
    %c0_9 = arith.constant 0 : index
    %c0_10 = arith.constant 0 : index
    %15 = vector.load %arg6[%c0_9, %c0_10] : memref<16x256xf32, #tpu.memory_space<vmem>>, vector<16x256xf32>
    tpu.vector_store %arg6[%c0_9, %c0_10], %14 {strides = array<i32>} : memref<16x256xf32, #tpu.memory_space<vmem>>, vector<16x256xf32>,
    return
  }
  func.func @transform_0(%arg0: i32) -> i32 {
    %c0_i32 = arith.constant 0 : i32
    %c0_i32_0 = arith.constant 0 : i32
    return %c0_i32 : i32
  }
  func.func @transform_1(%arg0: i32) -> (i32, i32) {
    %c0_i32 = arith.constant 0 : i32
    %c0_i32_0 = arith.constant 0 : i32
    %c0_i32_1 = arith.constant 0 : i32
    return %c0_i32, %c0_i32_0 : i32, i32
  }
  func.func @transform_2(%arg0: i32) -> (i32, i32) {
    %c0_i32 = arith.constant 0 : i32
    %c0_i32_0 = arith.constant 0 : i32
    return %c0_i32, %arg0 : i32, i32
  }
  func.func @transform_3(%arg0: i32) -> (i32, i32) {
    %c0_i32 = arith.constant 0 : i32
    %c0_i32_0 = arith.constant 0 : i32
    %c0_i32_1 = arith.constant 0 : i32
    return %c0_i32, %c0_i32_0 : i32, i32
  }
  func.func @transform_4(%arg0: i32) -> (i32, i32) {
    %c0_i32 = arith.constant 0 : i32
    %c0_i32_0 = arith.constant 0 : i32
    return %c0_i32, %arg0 : i32, i32
  }
  func.func @transform_5(%arg0: i32) -> (i32, i32) {
    %c0_i32 = arith.constant 0 : i32
    %c0_i32_0 = arith.constant 0 : i32
    return %c0_i32, %arg0 : i32, i32
  }
}

module attributes {stable_mosaic.version = 11 : i64} {
  func.func @kernel(%arg0: i32, %arg1: memref<1xf32, #tpu.memory_space<smem>>, %arg2: memref<4x144xbf16, #tpu.memory_space<vmem>>, %arg3: memref<144x256xbf16, #tpu.memory_space<vmem>>, %arg4: memref<4x1xf32, #tpu.memory_space<vmem>>, %arg5: memref<4x256xbf16, #tpu.memory_space<vmem>>, %arg6: memref<4x256xbf16, #tpu.memory_space<vmem>>) attributes {dimension_semantics = [#tpu.dimension_semantics<parallel>], iteration_bounds = array<i64: 2>, scalar_prefetch = 0 : i64, scratch_operands = 0 : i64, tpu.core_type = #tpu.core_type<tc>, window_params = [{transform_indices = @transform_0, window_bounds = array<i64: 1>}, {pipeline_mode = #tpu.pipeline_mode<synchronous>, transform_indices = @transform_1, window_bounds = array<i64: 4, 144>}, {transform_indices = @transform_2, window_bounds = array<i64: 144, 256>}, {pipeline_mode = #tpu.pipeline_mode<synchronous>, transform_indices = @transform_3, window_bounds = array<i64: 4, 1>}, {transform_indices = @transform_4, window_bounds = array<i64: 4, 256>}, {transform_indices = @transform_5, window_bounds = array<i64: 4, 256>}]} {
    %c0 = arith.constant 0 : index
    %c0_0 = arith.constant 0 : index
    %0 = vector.load %arg2[%c0, %c0_0] : memref<4x144xbf16, #tpu.memory_space<vmem>>, vector<4x144xbf16>
    %c0_1 = arith.constant 0 : index
    %c0_2 = arith.constant 0 : index
    %1 = vector.load %arg3[%c0_1, %c0_2] : memref<144x256xbf16, #tpu.memory_space<vmem>>, vector<144x256xbf16>
    %cst = arith.constant dense<0.000000e+00> : vector<4x256xf32>
    %2 = tpu.matmul %0, %1, %cst {dimension_numbers = #tpu.dot_dimension_numbers<[1], [0], [0], [1], [0, 0, 1, 1], [], []>} : vector<4x144xbf16>, vector<144x256xbf16>, vector<4x256xf32> -> vector<4x256xf32>
    %c0_3 = arith.constant 0 : index
    %c0_4 = arith.constant 0 : index
    %3 = vector.load %arg4[%c0_3, %c0_4] : memref<4x1xf32, #tpu.memory_space<vmem>>, vector<4x1xf32>
    %4 = vector.broadcast %3 : vector<4x1xf32> to vector<4x256xf32>
    %5 = arith.addf %2, %4 : vector<4x256xf32>
    %c0_5 = arith.constant 0 : index
    %6 = memref.load %arg1[%c0_5] : memref<1xf32, #tpu.memory_space<smem>>
    %cst_6 = arith.constant 0.000000e+00 : f32
    %7 = vector.broadcast %cst_6 : f32 to vector<4x256xf32>
    %8 = arith.cmpf oge, %5, %7 : vector<4x256xf32>
    %9 = vector.broadcast %6 : f32 to vector<4x256xf32>
    %10 = arith.mulf %9, %5 : vector<4x256xf32>
    %11 = arith.select %8, %5, %10 : vector<4x256xi1>, vector<4x256xf32>
    %c0_7 = arith.constant 0 : index
    %c0_8 = arith.constant 0 : index
    %12 = vector.load %arg5[%c0_7, %c0_8] : memref<4x256xbf16, #tpu.memory_space<vmem>>, vector<4x256xbf16>
    %13 = arith.extf %12 : vector<4x256xbf16> to vector<4x256xf32>
    %14 = arith.subf %11, %13 : vector<4x256xf32>
    %15 = arith.truncf %14 : vector<4x256xf32> to vector<4x256xbf16>
    %c0_9 = arith.constant 0 : index
    %c0_10 = arith.constant 0 : index
    %16 = vector.load %arg6[%c0_9, %c0_10] : memref<4x256xbf16, #tpu.memory_space<vmem>>, vector<4x256xbf16>
    tpu.vector_store %arg6[%c0_9, %c0_10], %15 {strides = array<i32>} : memref<4x256xbf16, #tpu.memory_space<vmem>>, vector<4x256xbf16>,
    return
  }
  func.func @transform_0(%arg0: i32) -> i32 {
    %c0_i32 = arith.constant 0 : i32
    %c0_i32_0 = arith.constant 0 : i32
    return %c0_i32 : i32
  }
  func.func @transform_1(%arg0: i32) -> (i32, i32) {
    %c0_i32 = arith.constant 0 : i32
    %c0_i32_0 = arith.constant 0 : i32
    %c0_i32_1 = arith.constant 0 : i32
    return %c0_i32, %c0_i32_0 : i32, i32
  }
  func.func @transform_2(%arg0: i32) -> (i32, i32) {
    %c0_i32 = arith.constant 0 : i32
    %c0_i32_0 = arith.constant 0 : i32
    return %c0_i32, %arg0 : i32, i32
  }
  func.func @transform_3(%arg0: i32) -> (i32, i32) {
    %c0_i32 = arith.constant 0 : i32
    %c0_i32_0 = arith.constant 0 : i32
    %c0_i32_1 = arith.constant 0 : i32
    return %c0_i32, %c0_i32_0 : i32, i32
  }
  func.func @transform_4(%arg0: i32) -> (i32, i32) {
    %c0_i32 = arith.constant 0 : i32
    %c0_i32_0 = arith.constant 0 : i32
    return %c0_i32, %arg0 : i32, i32
  }
  func.func @transform_5(%arg0: i32) -> (i32, i32) {
    %c0_i32 = arith.constant 0 : i32
    %c0_i32_0 = arith.constant 0 : i32
    return %c0_i32, %arg0 : i32, i32
  }
}

</mosaic_0001>

<llo_original>
// kernel: deep_up_projection_block.4
$region0: #{deep_up_projection_block.4}
  #allocation0 [shape = 'u32[]', space=smem, size = 0x4, offset = 0x4, fixed_abs, tag = 'smem constant byte address 0x4 - core index']
  #allocation1 [shape = 'u32[144,128]{1,0:T(1,128)}', space=vmem, size = 0x12000, scoped, tag = 'internal scratch']
  #allocation2 [shape = 'f32[1]{0:T(128)S(6)}', space=smem, size = 0x200, scoped, tag = 'scoped memory for deep_up_projection_block.4']
  %s0 = inlined_call_operand.<no memory space> [shape: f32[1], index: 0, kind: input, shape index: {}]
  %s1 = inlined_call_operand.vmem [shape: bf16[4,8], index: 1, kind: input, shape index: {}]
  %s2 = inlined_call_operand.vmem [shape: bf16[8,512], index: 2, kind: input, shape index: {}]
  %s3 = inlined_call_operand.vmem [shape: f32[4,1], index: 3, kind: input, shape index: {}]
  %s4 = inlined_call_operand.vmem [shape: bf16[4,512], index: 4, kind: output, shape index: {}]
  %s5 = sld [smem:[#allocation0]]
  $region49: #{deep_up_projection_block.4} parent=0
    _
  %s7 = ssub.s32 1, %s5
  %s8 = scalar_select 0, %s7, %s5
  %9 = sst [smem:[#allocation2]] %s0
  loop: start=0, step=1, limit=4
  $region2: #{deep_up_projection_block.4} parent=0 // loop_pre_header
    _
  $region3: #{deep_up_projection_block.4} parent=0 // loop_header
    %s11 = sphi 0, %s15
    %p12 = scmp.ge.s32.totalorder %s11, 4
    %s19 = sphi 0, %s19
    %s21 = sphi 0, %s19
    %s22 = sphi 0, %s21
    %s36 = sphi 0, %s22
    %s40 = sphi 0, %s40
    %s42 = sphi 0, %s40
    %s43 = sphi 0, %s42
    %s57 = sphi 0, %s43
    %s63 = sphi 0, %s65
    %s66 = sphi 0, %s63
    %s67 = sphi 0, %s66
    %s83 = sphi 0, %s67
    %s87 = sphi 0, %s87
    %s89 = sphi 0, %s87
    %s90 = sphi 0, %s89
    %s104 = sphi 0, %s90
    %s110 = sphi 0, %s112
    %s113 = sphi 0, %s110
    %s114 = sphi 0, %s113
    %s130 = sphi 0, %s114
  $region4: #{deep_up_projection_block.4} parent=0 // loop_header_branch
    %14 = sbr.rel (%p12) target = $region8
  $region5: #{deep_up_projection_block.4} parent=0 // loop_body
    %s16 = ssub.s32 %s11, 1
    %s17 = ssub.s32 %s11, 2
    %s18 = sadd.s32 %s11, 1
    %s20 = sadd.s32 %s19, 1
    %p23 = scmp.eq.s32.totalorder %s11, 1
    %p24 = scmp.ne.s32.totalorder %s19, %s21
    %p25 = scmp.eq.s32.totalorder %s11, 0
    %p26 = por %p24, %p25
    %p27 = scmp.ne.s32.totalorder %s19, %s21
    %p28 = scmp.eq.s32.totalorder %s16, 1
    %p29 = por %p27, %p28
    %p30 = scmp.ne.s32.totalorder %s21, %s22
    %p31 = scmp.eq.s32.totalorder %s16, 0
    %p32 = por %p30, %p31
    %p33 = scmp.ne.s32.totalorder %s21, %s22
    %p34 = scmp.eq.s32.totalorder %s17, 1
    %p35 = por %p33, %p34
    %p37 = scmp.ne.s32.totalorder %s22, %s36
    %p38 = scmp.eq.s32.totalorder %s17, 0
    %p39 = por %p37, %p38
    %s41 = sadd.s32 %s40, 1
    %p44 = scmp.eq.s32.totalorder %s11, 1
    %p45 = scmp.ne.s32.totalorder %s40, %s42
    %p46 = scmp.eq.s32.totalorder %s11, 0
    %p47 = por %p45, %p46
    %p48 = scmp.ne.s32.totalorder %s40, %s42
    %p49 = scmp.eq.s32.totalorder %s16, 1
    %p50 = por %p48, %p49
    %p51 = scmp.ne.s32.totalorder %s42, %s43
    %p52 = scmp.eq.s32.totalorder %s16, 0
    %p53 = por %p51, %p52
    %p54 = scmp.ne.s32.totalorder %s42, %s43
    %p55 = scmp.eq.s32.totalorder %s17, 1
    %p56 = por %p54, %p55
    %p58 = scmp.ne.s32.totalorder %s43, %s57
    %p59 = scmp.eq.s32.totalorder %s17, 0
    %p60 = por %p58, %p59
    %s61 = ssub.s32 %s11, %s18
    %p62 = scmp.eq.s32.totalorder %s61, 0
    %s64 = sadd.s32 %s63, 1
    %s65 = scalar_select %p62, %s63, %s64
    %p68 = pneg %p62
    %p69 = scmp.eq.s32.totalorder %s11, 1
    %p70 = por %p68, %p69
    %p71 = scmp.ne.s32.totalorder %s63, %s66
    %p72 = scmp.eq.s32.totalorder %s11, 0
    %p73 = por %p71, %p72
    %p74 = scmp.ne.s32.totalorder %s63, %s66
    %p75 = scmp.eq.s32.totalorder %s16, 1
    %p76 = por %p74, %p75
    %p77 = scmp.ne.s32.totalorder %s66, %s67
    %p78 = scmp.eq.s32.totalorder %s16, 0
    %p79 = por %p77, %p78
    %p80 = scmp.ne.s32.totalorder %s66, %s67
    %p81 = scmp.eq.s32.totalorder %s17, 1
    %p82 = por %p80, %p81
    %p84 = scmp.ne.s32.totalorder %s67, %s83
    %p85 = scmp.eq.s32.totalorder %s17, 0
    %p86 = por %p84, %p85
    %s88 = sadd.s32 %s87, 1
    %p91 = scmp.eq.s32.totalorder %s11, 1
    %p92 = scmp.ne.s32.totalorder %s87, %s89
    %p93 = scmp.eq.s32.totalorder %s11, 0
    %p94 = por %p92, %p93
    %p95 = scmp.ne.s32.totalorder %s87, %s89
    %p96 = scmp.eq.s32.totalorder %s16, 1
    %p97 = por %p95, %p96
    %p98 = scmp.ne.s32.totalorder %s89, %s90
    %p99 = scmp.eq.s32.totalorder %s16, 0
    %p100 = por %p98, %p99
    %p101 = scmp.ne.s32.totalorder %s89, %s90
    %p102 = scmp.eq.s32.totalorder %s17, 1
    %p103 = por %p101, %p102
    %p105 = scmp.ne.s32.totalorder %s90, %s104
    %p106 = scmp.eq.s32.totalorder %s17, 0
    %p107 = por %p105, %p106
    %s108 = ssub.s32 %s11, %s18
    %p109 = scmp.eq.s32.totalorder %s108, 0
    %s111 = sadd.s32 %s110, 1
    %s112 = scalar_select %p109, %s110, %s111
    %p115 = pneg %p109
    %p116 = scmp.eq.s32.totalorder %s11, 1
    %p117 = por %p115, %p116
    %p118 = scmp.ne.s32.totalorder %s110, %s113
    %p119 = scmp.eq.s32.totalorder %s11, 0
    %p120 = por %p118, %p119
    %p121 = scmp.ne.s32.totalorder %s110, %s113
    %p122 = scmp.eq.s32.totalorder %s16, 1
    %p123 = por %p121, %p122
    %p124 = scmp.ne.s32.totalorder %s113, %s114
    %p125 = scmp.eq.s32.totalorder %s16, 0
    %p126 = por %p124, %p125
    %p127 = scmp.ne.s32.totalorder %s113, %s114
    %p128 = scmp.eq.s32.totalorder %s17, 1
    %p129 = por %p127, %p128
    %p131 = scmp.ne.s32.totalorder %s114, %s130
    %p132 = scmp.eq.s32.totalorder %s17, 0
    %p133 = por %p131, %p132
    %p134 = scmp.le.s32.totalorder 1, %s11
    %p135 = scmp.lt.s32.totalorder %s11, 3
    %p136 = pnand %p134, %p135
    %p137 = pneg %p136
    // Predicated region
    $region9: #{deep_up_projection_block.4} parent=5 // pred_check
      _
    $region10: #{deep_up_projection_block.4} parent=5 // pred_check_branch
      %139 = sbr.rel (%p136) target = $region12
    $region11: #{deep_up_projection_block.4} parent=5 // pred_region
      %s140 = ssub.s32 %s11, 1
      // Predicated region
      $region13: #{deep_up_projection_block.4} parent=11 // pred_check
        %p141 = pneg %p32
      $region14: #{deep_up_projection_block.4} parent=11 // pred_check_branch
        %143 = sbr.rel (%p141) target = $region16
      $region15: #{deep_up_projection_block.4} parent=11 // pred_region
        _
      $region16: #{deep_up_projection_block.4} parent=11 // pred_fallthru
        _
      // Predicated region
      $region17: #{deep_up_projection_block.4} parent=11 // pred_check
        %p144 = pneg %p53
      $region18: #{deep_up_projection_block.4} parent=11 // pred_check_branch
        %146 = sbr.rel (%p144) target = $region20
      $region19: #{deep_up_projection_block.4} parent=11 // pred_region
        _
      $region20: #{deep_up_projection_block.4} parent=11 // pred_fallthru
        _
      // Predicated region
      $region21: #{deep_up_projection_block.4} parent=11 // pred_check
        %p147 = pneg %p100
      $region22: #{deep_up_projection_block.4} parent=11 // pred_check_branch
        %149 = sbr.rel (%p147) target = $region24
      $region23: #{deep_up_projection_block.4} parent=11 // pred_region
        _
      $region24: #{deep_up_projection_block.4} parent=11 // pred_fallthru
        _
    $region12: #{deep_up_projection_block.4} parent=5 // pred_fallthru
      _
    %p150 = scmp.lt.s32.totalorder %s11, 2
    // Predicated region
    $region25: #{deep_up_projection_block.4} parent=5 // pred_check
      %p151 = pneg %p150
    $region26: #{deep_up_projection_block.4} parent=5 // pred_check_branch
      %153 = sbr.rel (%p151) target = $region28
    $region27: #{deep_up_projection_block.4} parent=5 // pred_region
      // Predicated region
      $region29: #{deep_up_projection_block.4} parent=27 // pred_check
        %p154 = pneg %p73
      $region30: #{deep_up_projection_block.4} parent=27 // pred_check_branch
        %156 = sbr.rel (%p154) target = $region32
      $region31: #{deep_up_projection_block.4} parent=27 // pred_region
        %s157 = smul.u32 2, %s11
        %p158 = scmp.lt.s32.totalorder %s157, 3
        %s159 = scalar_select %p158, %s157, 3
        %s160 = smul.addr %s159, 4
        %s161 = scalar_lea.vmem %s2, %s160
        %s162 = smul.u32 2, %s11
      $region32: #{deep_up_projection_block.4} parent=27 // pred_fallthru
        _
    $region28: #{deep_up_projection_block.4} parent=5 // pred_fallthru
      _
    %p163 = scmp.le.s32.totalorder 1, %s11
    %p164 = scmp.lt.s32.totalorder %s11, 3
    %p165 = pnand %p163, %p164
    %p166 = pneg %p165
    // Predicated region
    $region33: #{deep_up_projection_block.4} parent=5 // pred_check
      _
    $region34: #{deep_up_projection_block.4} parent=5 // pred_check_branch
      %168 = sbr.rel (%p165) target = $region36
    $region35: #{deep_up_projection_block.4} parent=5 // pred_region
      %s169 = ssub.s32 %s11, 1
      %p170 = pneg %p32
      %p171 = pneg %p29
      %p172 = pneg %p53
      %p173 = pneg %p50
      %s174 = smul.u32 2, %s16
      %p175 = scmp.lt.s32.totalorder %s174, 3
      %s176 = scalar_select %p175, %s174, 3
      %s177 = smul.addr %s176, 4
      %s178 = scalar_lea.vmem %s2, %s177
      %p179 = pneg %p79
      %p180 = pneg %p76
      %p181 = pneg %p100
      %p182 = pneg %p97
      %p183 = pneg %p126
      %p184 = pneg %p123
      %s185 = smul.u32 2, %s16
      %p186 = scmp.lt.s32.totalorder %s185, 3
      %s187 = scalar_select %p186, %s185, 3
      %s188 = smul.addr %s187, 2
      %s189 = scalar_lea.vmem %s4, %s188
      %s190 = smul.u32 2, %s16
      %p191 = scmp.lt.s32.totalorder %s190, 3
      %s192 = scalar_select %p191, %s190, 3
      %s193 = smul.addr %s192, 4
      %s194 = scalar_lea.vmem %s2, %s193
      %s195 = smul.u32 2, %s16
      %s196 = smul.u32 2, %s16
      %p197 = scmp.lt.s32.totalorder %s196, 3
      %s198 = scalar_select %p197, %s196, 3
      %s199 = smul.addr %s198, 2
      %s200 = scalar_lea.vmem %s4, %s199
      %s201 = smul.u32 2, %s16
      %v203 = vld [vmem:[%s1] sm:$0x3]
      %v204 = vld [vmem:[%s194] sm:$0xff]
      %v205 = vld [vmem:[%s3] sm:$0xf]
      %207 = vset.pattern.permute.xlu0 0
      %208 = vperm.xlu0 %207, %v205
      %v209 = vpop.permute.xlu0 %208
      %v212 = vunpack.c.l.b16 %v204
      %v213 = vunpack.c.h.b16 %v204
      %v214 = vpack.c.b16 %v212, %v212
      %v215 = vpack.c.b16 %v213, %v213
      %vm216 = vcmask 64512
      %v218 = vsel %vm216, %v203, 0
      %vm220 = vcmask 1043456
      %v222 = vsel %vm220, %v214, 0
      %v225 = vsel %vm220, %v215, 0
      %227 = vmatprep.subr.bf16.mxu0 %v225
      %228 = vmatpush1.bf16.msra.mxu0 %v222
      %229 = vmatprep.subr.bf16.mxu0 0
      %230 = vmatpush1.bf16.msra.mxu0 0
      %231 = vmatprep.subr.bf16.mxu0 0
      %232 = vmatpush1.bf16.msra.mxu0 0
      %233 = vmatprep.subr.bf16.mxu0 0
      %234 = vmatpush1.bf16.msra.mxu0 0
      %235 = vmatprep.subr.bf16.mxu0 0
      %236 = vmatpush1.bf16.msra.mxu0 0
      %237 = vmatprep.subr.bf16.mxu0 0
      %238 = vmatpush1.bf16.msra.mxu0 0
      %239 = vmatprep.subr.bf16.mxu0 0
      %240 = vmatpush1.bf16.msra.mxu0 0
      %241 = vmatprep.subr.bf16.mxu0 0
      %242 = vmatpush1.bf16.msra.mxu0 0
      %243 = vmatprep.subr.bf16.mxu0 0
      %244 = vmatpush1.bf16.msra.mxu0 0
      %245 = vmatprep.subr.bf16.mxu0 0
      %246 = vmatpush1.bf16.msra.mxu0 0
      %247 = vmatprep.subr.bf16.mxu0 0
      %248 = vmatpush1.bf16.msra.mxu0 0
      %249 = vmatprep.subr.bf16.mxu0 0
      %250 = vmatpush1.bf16.msra.mxu0 0
      %251 = vmatprep.subr.bf16.mxu0 0
      %252 = vmatpush1.bf16.msra.mxu0 0
      %253 = vmatprep.subr.bf16.mxu0 0
      %254 = vmatpush1.bf16.msra.mxu0 0
      %255 = vmatprep.subr.bf16.mxu0 0
      %256 = vmatpush1.bf16.msra.mxu0 0
      %257 = vmatprep.subr.bf16.mxu0 0
      %258 = vmatpush1.bf16.msra.mxu0 0
      %259 = vmatprep.mubr.bf16.mxu0 0
      %260 = vmatmul.mubr.bf16.gmra.mrb[0].mxu0 %v218
      %v261 = vpop.f32.mrb[0].mxu0
      %v262 = vadd.f32 %v209, %v261
      %v263 = vpop.f32.mrb[0].mxu0
      %v264 = vadd.f32 %v209, %v263
      %v265 = vpop.f32.mrb[0].mxu0
      %v266 = vpop.f32.mrb[0].mxu0
      %267 = vdwg.mxu0
      %s268 = sld [smem:[#allocation2]]
      %vm269 = vcmp.ge.f32.partialorder %v262, 0.0
      %vm270 = vcmp.ge.f32.partialorder %v264, 0.0
      %v271 = vstv %s268
      %v272 = vmul.f32 %v271, %v262
      %v273 = vmul.f32 %v271, %v264
      %v274 = vsel %vm269, %v262, %v272
      %v275 = vsel %vm270, %v264, %v273
      %v276 = vpack.c.bf16 %v274, %v274
      %v277 = vpack.c.bf16 %v275, %v275
      %v280 = vcombine.low %v276, %v277
      %v282 = vunpack.c.l.s4 1983009808
      %v283 = vunpack.c.0.s8 %v282
      %v284 = vlaneseq
      %v285 = vshrl.u32 %v284, 7
      %v286 = vsub.s32 %v283, %v285
      %v287 = vrot.slane %v280, %v286
      %289 = vst [vmem:[%s200] sm:$0xf] %v287
      %s290 = smul.u32 2, %s16
      %p291 = scmp.lt.s32.totalorder %s290, 3
      %s292 = scalar_select %p291, %s290, 3
      %s293 = smul.addr %s292, 2
      %s294 = scalar_lea.vmem %s4, %s293
      // Predicated region
      $region37: #{deep_up_projection_block.4} parent=35 // pred_check
        %p295 = pneg %p123
      $region38: #{deep_up_projection_block.4} parent=35 // pred_check_branch
        %297 = sbr.rel (%p295) target = $region40
      $region39: #{deep_up_projection_block.4} parent=35 // pred_region
        %s298 = smul.u32 2, %s16
      $region40: #{deep_up_projection_block.4} parent=35 // pred_fallthru
        _
    $region36: #{deep_up_projection_block.4} parent=5 // pred_fallthru
      _
    %p299 = scmp.le.s32.totalorder 2, %s11
    // Predicated region
    $region41: #{deep_up_projection_block.4} parent=5 // pred_check
      %p300 = pneg %p299
    $region42: #{deep_up_projection_block.4} parent=5 // pred_check_branch
      %302 = sbr.rel (%p300) target = $region44
    $region43: #{deep_up_projection_block.4} parent=5 // pred_region
      %s303 = ssub.s32 %s11, 2
      // Predicated region
      $region45: #{deep_up_projection_block.4} parent=43 // pred_check
        %p304 = pneg %p129
      $region46: #{deep_up_projection_block.4} parent=43 // pred_check_branch
        %306 = sbr.rel (%p304) target = $region48
      $region47: #{deep_up_projection_block.4} parent=43 // pred_region
        %s307 = smul.u32 2, %s17
        %p308 = scmp.lt.s32.totalorder %s307, 3
        %s309 = scalar_select %p308, %s307, 3
        %s310 = smul.addr %s309, 2
        %s311 = scalar_lea.vmem %s4, %s310
      $region48: #{deep_up_projection_block.4} parent=43 // pred_fallthru
        _
    $region44: #{deep_up_projection_block.4} parent=5 // pred_fallthru
      _
  $region6: #{deep_up_projection_block.4} parent=0 // loop_footer
    %s15 = sadd.s32 1, %s11
  $region7: #{deep_up_projection_block.4} parent=0 // loop_footer_branch
    %10 = sbr.rel target = $region3
  $region8: #{deep_up_projection_block.4} parent=0 // loop_exit
    _

// kernel: tile.13
$region0: #{tile.13}
  #allocation0 [shape = 's32[1]{0}', space=sflag, size = 0x4, scoped, tag = 'scoped memory for tile.13']
  %s0 = inlined_call_operand.vmem [shape: f32[4], index: 0, kind: input, shape index: {}]
  %s1 = inlined_call_operand.vmem [shape: f32[4,4], index: 1, kind: output, shape index: {}]
  // Predicated region
  $region2: #{tile.13} parent=0 // pred_check
    _
  $region3: #{tile.13} parent=0 // pred_check_branch
    %3 = sbr.rel (0) target = $region5
  $region4: #{tile.13} parent=0 // pred_region
    _
  $region5: #{tile.13} parent=0 // pred_fallthru
    _
  %v4 = vld [vmem:[%s0] ss:$0 sm:$0xff]
  %5 = vst [vmem:[%s1] sm:$0xf] %v4

// kernel: tile.0
$region0: #{tile.0}
  %s0 = inlined_call_operand.vmem [shape: f32[4,4], index: 0, kind: input, shape index: {}]
  %s1 = inlined_call_operand.vmem [shape: f32[16,1], index: 1, kind: output, shape index: {}]
  $region1: #{tile.0} parent=0
    #allocation0 [shape = 'u8[4096]{0}', space=vmem, size = 0x1000, scoped, tag = 'scoped mem for input reshape']
    %s3 = sshllo.u32 0, 4
    %v4 = vld [vmem:[%s0] sm:%s3]
    %5 = vst [vmem:[#allocation0] sm:%s3] %v4
    %v6 = vld [vmem:[#allocation0] sm:$0xf]
    %vm7 = vcmask 7168
    %8 = vst.msk [vmem:[%s1] ss:$4 sm:$0xf] %vm7, %v6
    %v9 = vld [vmem:[#allocation0] sm:$0xf]
    %10 = vrot.lane.b32.xlu0 %v9, 127
    %v11 = vpop.permute.xlu0 %10
    %vm12 = vcmask 7168
    %s13 = scalar_lea.vmem %s1, 1
    %14 = vst.msk [vmem:[%s13] ss:$4 sm:$0xf] %vm12, %v11
    %v15 = vld [vmem:[#allocation0] sm:$0xf]
    %16 = vrot.lane.b32.xlu0 %v15, 126
    %v17 = vpop.permute.xlu0 %16
    %vm18 = vcmask 7168
    %s19 = scalar_lea.vmem %s1, 2
    %20 = vst.msk [vmem:[%s19] ss:$4 sm:$0xf] %vm18, %v17
    %v21 = vld [vmem:[#allocation0] sm:$0xf]
    %22 = vrot.lane.b32.xlu0 %v21, 125
    %v23 = vpop.permute.xlu0 %22
    %vm24 = vcmask 7168
    %s25 = scalar_lea.vmem %s1, 3
    %26 = vst.msk [vmem:[%s25] ss:$4 sm:$0xf] %vm24, %v23

// kernel: deep_up_projection_block.5
$region0: #{deep_up_projection_block.5}
  #allocation0 [shape = 'u32[]', space=smem, size = 0x4, offset = 0x4, fixed_abs, tag = 'smem constant byte address 0x4 - core index']
  #allocation1 [shape = 'u32[144,128]{1,0:T(1,128)}', space=vmem, size = 0x12000, scoped, tag = 'internal scratch']
  #allocation2 [shape = 'f32[1]{0:T(128)S(6)}', space=smem, size = 0x200, scoped, tag = 'scoped memory for deep_up_projection_block.5']
  %s0 = inlined_call_operand.<no memory space> [shape: f32[1], index: 0, kind: input, shape index: {}]
  %s1 = inlined_call_operand.vmem [shape: bf16[16,36], index: 1, kind: input, shape index: {}]
  %s2 = inlined_call_operand.vmem [shape: bf16[36,512], index: 2, kind: input, shape index: {}]
  %s3 = inlined_call_operand.vmem [shape: f32[16,1], index: 3, kind: input, shape index: {}]
  %s4 = inlined_call_operand.vmem [shape: bf16[16,512], index: 4, kind: output, shape index: {}]
  %s5 = sld [smem:[#allocation0]]
  $region121: #{deep_up_projection_block.5} parent=0
    _
  %s7 = ssub.s32 1, %s5
  %s8 = scalar_select 0, %s7, %s5
  %9 = sst [smem:[#allocation2]] %s0
  $region1: #{deep_up_projection_block.5} parent=0
    #allocation3 [shape = 'u8[40960]{0}', space=vmem, size = 0xa000, scoped, tag = 'input window, operand 2']
    #allocation4 [shape = 'u8[16384]{0}', space=vmem, size = 0x4000, scoped, tag = 'output window, operand 0']
    loop: start=0, step=1, limit=4
    $region2: #{deep_up_projection_block.5} parent=1 // loop_pre_header
      _
    $region3: #{deep_up_projection_block.5} parent=1 // loop_header
      %s11 = sphi 0, %s15
      %p12 = scmp.ge.s32.totalorder %s11, 4
      %s19 = sphi 0, %s19
      %s21 = sphi 0, %s19
      %s22 = sphi 0, %s21
      %s36 = sphi 0, %s22
      %s40 = sphi 0, %s40
      %s42 = sphi 0, %s40
      %s43 = sphi 0, %s42
      %s57 = sphi 0, %s43
      %s63 = sphi 0, %s65
      %s66 = sphi 0, %s63
      %s67 = sphi 0, %s66
      %s83 = sphi 0, %s67
      %s87 = sphi 0, %s87
      %s89 = sphi 0, %s87
      %s90 = sphi 0, %s89
      %s104 = sphi 0, %s90
      %s110 = sphi 0, %s112
      %s113 = sphi 0, %s110
      %s114 = sphi 0, %s113
      %s130 = sphi 0, %s114
    $region4: #{deep_up_projection_block.5} parent=1 // loop_header_branch
      %14 = sbr.rel (%p12) target = $region8
    $region5: #{deep_up_projection_block.5} parent=1 // loop_body
      %s16 = ssub.s32 %s11, 1
      %s17 = ssub.s32 %s11, 2
      %s18 = sadd.s32 %s11, 1
      %s20 = sadd.s32 %s19, 1
      %p23 = scmp.eq.s32.totalorder %s11, 1
      %p24 = scmp.ne.s32.totalorder %s19, %s21
      %p25 = scmp.eq.s32.totalorder %s11, 0
      %p26 = por %p24, %p25
      %p27 = scmp.ne.s32.totalorder %s19, %s21
      %p28 = scmp.eq.s32.totalorder %s16, 1
      %p29 = por %p27, %p28
      %p30 = scmp.ne.s32.totalorder %s21, %s22
      %p31 = scmp.eq.s32.totalorder %s16, 0
      %p32 = por %p30, %p31
      %p33 = scmp.ne.s32.totalorder %s21, %s22
      %p34 = scmp.eq.s32.totalorder %s17, 1
      %p35 = por %p33, %p34
      %p37 = scmp.ne.s32.totalorder %s22, %s36
      %p38 = scmp.eq.s32.totalorder %s17, 0
      %p39 = por %p37, %p38
      %s41 = sadd.s32 %s40, 1
      %p44 = scmp.eq.s32.totalorder %s11, 1
      %p45 = scmp.ne.s32.totalorder %s40, %s42
      %p46 = scmp.eq.s32.totalorder %s11, 0
      %p47 = por %p45, %p46
      %p48 = scmp.ne.s32.totalorder %s40, %s42
      %p49 = scmp.eq.s32.totalorder %s16, 1
      %p50 = por %p48, %p49
      %p51 = scmp.ne.s32.totalorder %s42, %s43
      %p52 = scmp.eq.s32.totalorder %s16, 0
      %p53 = por %p51, %p52
      %p54 = scmp.ne.s32.totalorder %s42, %s43
      %p55 = scmp.eq.s32.totalorder %s17, 1
      %p56 = por %p54, %p55
      %p58 = scmp.ne.s32.totalorder %s43, %s57
      %p59 = scmp.eq.s32.totalorder %s17, 0
      %p60 = por %p58, %p59
      %s61 = ssub.s32 %s11, %s18
      %p62 = scmp.eq.s32.totalorder %s61, 0
      %s64 = sadd.s32 %s63, 1
      %s65 = scalar_select %p62, %s63, %s64
      %p68 = pneg %p62
      %p69 = scmp.eq.s32.totalorder %s11, 1
      %p70 = por %p68, %p69
      %p71 = scmp.ne.s32.totalorder %s63, %s66
      %p72 = scmp.eq.s32.totalorder %s11, 0
      %p73 = por %p71, %p72
      %p74 = scmp.ne.s32.totalorder %s63, %s66
      %p75 = scmp.eq.s32.totalorder %s16, 1
      %p76 = por %p74, %p75
      %p77 = scmp.ne.s32.totalorder %s66, %s67
      %p78 = scmp.eq.s32.totalorder %s16, 0
      %p79 = por %p77, %p78
      %p80 = scmp.ne.s32.totalorder %s66, %s67
      %p81 = scmp.eq.s32.totalorder %s17, 1
      %p82 = por %p80, %p81
      %p84 = scmp.ne.s32.totalorder %s67, %s83
      %p85 = scmp.eq.s32.totalorder %s17, 0
      %p86 = por %p84, %p85
      %s88 = sadd.s32 %s87, 1
      %p91 = scmp.eq.s32.totalorder %s11, 1
      %p92 = scmp.ne.s32.totalorder %s87, %s89
      %p93 = scmp.eq.s32.totalorder %s11, 0
      %p94 = por %p92, %p93
      %p95 = scmp.ne.s32.totalorder %s87, %s89
      %p96 = scmp.eq.s32.totalorder %s16, 1
      %p97 = por %p95, %p96
      %p98 = scmp.ne.s32.totalorder %s89, %s90
      %p99 = scmp.eq.s32.totalorder %s16, 0
      %p100 = por %p98, %p99
      %p101 = scmp.ne.s32.totalorder %s89, %s90
      %p102 = scmp.eq.s32.totalorder %s17, 1
      %p103 = por %p101, %p102
      %p105 = scmp.ne.s32.totalorder %s90, %s104
      %p106 = scmp.eq.s32.totalorder %s17, 0
      %p107 = por %p105, %p106
      %s108 = ssub.s32 %s11, %s18
      %p109 = scmp.eq.s32.totalorder %s108, 0
      %s111 = sadd.s32 %s110, 1
      %s112 = scalar_select %p109, %s110, %s111
      %p115 = pneg %p109
      %p116 = scmp.eq.s32.totalorder %s11, 1
      %p117 = por %p115, %p116
      %p118 = scmp.ne.s32.totalorder %s110, %s113
      %p119 = scmp.eq.s32.totalorder %s11, 0
      %p120 = por %p118, %p119
      %p121 = scmp.ne.s32.totalorder %s110, %s113
      %p122 = scmp.eq.s32.totalorder %s16, 1
      %p123 = por %p121, %p122
      %p124 = scmp.ne.s32.totalorder %s113, %s114
      %p125 = scmp.eq.s32.totalorder %s16, 0
      %p126 = por %p124, %p125
      %p127 = scmp.ne.s32.totalorder %s113, %s114
      %p128 = scmp.eq.s32.totalorder %s17, 1
      %p129 = por %p127, %p128
      %p131 = scmp.ne.s32.totalorder %s114, %s130
      %p132 = scmp.eq.s32.totalorder %s17, 0
      %p133 = por %p131, %p132
      %p134 = scmp.le.s32.totalorder 1, %s11
      %p135 = scmp.lt.s32.totalorder %s11, 3
      %p136 = pnand %p134, %p135
      %p137 = pneg %p136
      // Predicated region
      $region9: #{deep_up_projection_block.5} parent=5 // pred_check
        _
      $region10: #{deep_up_projection_block.5} parent=5 // pred_check_branch
        %139 = sbr.rel (%p136) target = $region12
      $region11: #{deep_up_projection_block.5} parent=5 // pred_region
        %s140 = ssub.s32 %s11, 1
        // Predicated region
        $region13: #{deep_up_projection_block.5} parent=11 // pred_check
          %p141 = pneg %p32
        $region14: #{deep_up_projection_block.5} parent=11 // pred_check_branch
          %143 = sbr.rel (%p141) target = $region16
        $region15: #{deep_up_projection_block.5} parent=11 // pred_region
          _
        $region16: #{deep_up_projection_block.5} parent=11 // pred_fallthru
          _
        // Predicated region
        $region17: #{deep_up_projection_block.5} parent=11 // pred_check
          %p144 = pneg %p53
        $region18: #{deep_up_projection_block.5} parent=11 // pred_check_branch
          %146 = sbr.rel (%p144) target = $region20
        $region19: #{deep_up_projection_block.5} parent=11 // pred_region
          _
        $region20: #{deep_up_projection_block.5} parent=11 // pred_fallthru
          _
        // Predicated region
        $region21: #{deep_up_projection_block.5} parent=11 // pred_check
          %p147 = pneg %p100
        $region22: #{deep_up_projection_block.5} parent=11 // pred_check_branch
          %149 = sbr.rel (%p147) target = $region24
        $region23: #{deep_up_projection_block.5} parent=11 // pred_region
          _
        $region24: #{deep_up_projection_block.5} parent=11 // pred_fallthru
          _
      $region12: #{deep_up_projection_block.5} parent=5 // pred_fallthru
        _
      %p150 = scmp.lt.s32.totalorder %s11, 2
      // Predicated region
      $region25: #{deep_up_projection_block.5} parent=5 // pred_check
        %p151 = pneg %p150
      $region26: #{deep_up_projection_block.5} parent=5 // pred_check_branch
        %153 = sbr.rel (%p151) target = $region28
      $region27: #{deep_up_projection_block.5} parent=5 // pred_region
        // Predicated region
        $region29: #{deep_up_projection_block.5} parent=27 // pred_check
          %p154 = pneg %p73
        $region30: #{deep_up_projection_block.5} parent=27 // pred_check_branch
          %156 = sbr.rel (%p154) target = $region32
        $region31: #{deep_up_projection_block.5} parent=27 // pred_region
          %s157 = sand.u32 %s63, 1
          %s158 = sand.u32 %s63, 1
          %s159 = smul.addr %s158, 40
          %s160 = scalar_lea.vmem [#allocation3], %s159
          %s161 = smul.u32 2, %s11
          %s162 = smul.addr %s161, 4
          %s163 = scalar_lea.vmem %s2, %s162
          // Predicated region
          $region33: #{deep_up_projection_block.5} parent=31 // pred_check
            _
          $region34: #{deep_up_projection_block.5} parent=31 // pred_check_branch
            %165 = sbr.rel (0) target = $region36
          $region35: #{deep_up_projection_block.5} parent=31 // pred_region
            // Predicated region
            $region37: #{deep_up_projection_block.5} parent=35 // pred_check
              _
            $region38: #{deep_up_projection_block.5} parent=35 // pred_check_branch
              %167 = sbr.rel (0) target = $region40
            $region39: #{deep_up_projection_block.5} parent=35 // pred_region
              // Predicated region
              $region52: #{deep_up_projection_block.5} parent=39 // pred_check
                _
              $region53: #{deep_up_projection_block.5} parent=39 // pred_check_branch
                %190 = sbr.rel (0) target = $region55
              $region54: #{deep_up_projection_block.5} parent=39 // pred_region
                loop: start=0, step=1, limit=1
                $region56: #{deep_up_projection_block.5} parent=54 // loop_pre_header
                  _
                $region57: #{deep_up_projection_block.5} parent=54 // loop_header
                  %s192 = sphi 0, %s196
                  %p193 = scmp.ge.s32.totalorder %s192, 1
                  %s197 = sphi %s163, %s163
                  %s198 = sphi %s160, %s160
                $region58: #{deep_up_projection_block.5} parent=54 // loop_header_branch
                  %195 = sbr.rel (%p193) target = $region62
                $region59: #{deep_up_projection_block.5} parent=54 // loop_body
                  %v199 = vld [vmem:[%s197] sm:$0xff]
                  %200 = vst [vmem:[%s198] sm:$0xff] %v199
                  %v201 = vld [vmem:[%s197 + $0x10] sm:$0xff]
                  %202 = vst [vmem:[%s198 + $0x8] sm:$0xff] %v201
                  %v203 = vld [vmem:[%s197 + $0x20] sm:$0xff]
                  %204 = vst [vmem:[%s198 + $0x10] sm:$0xff] %v203
                  %v205 = vld [vmem:[%s197 + $0x30] sm:$0xff]
                  %206 = vst [vmem:[%s198 + $0x18] sm:$0xff] %v205
                  %v207 = vld [vmem:[%s197 + $0x40] sm:$0xff]
                  %208 = vst [vmem:[%s198 + $0x20] sm:$0xff] %v207
                $region60: #{deep_up_projection_block.5} parent=54 // loop_footer
                  %s196 = sadd.s32 1, %s192
                $region61: #{deep_up_projection_block.5} parent=54 // loop_footer_branch
                  %191 = sbr.rel target = $region57
                $region62: #{deep_up_projection_block.5} parent=54 // loop_exit
                  _
              $region55: #{deep_up_projection_block.5} parent=39 // pred_fallthru
                _
              // Predicated region
              $region63: #{deep_up_projection_block.5} parent=39 // pred_check
                _
              $region64: #{deep_up_projection_block.5} parent=39 // pred_check_branch
                %210 = sbr.rel target = $region66
              $region65: #{deep_up_projection_block.5} parent=39 // pred_region
                _
              $region66: #{deep_up_projection_block.5} parent=39 // pred_fallthru
                _
            $region40: #{deep_up_projection_block.5} parent=35 // pred_fallthru
              _
            // Predicated region
            $region41: #{deep_up_projection_block.5} parent=35 // pred_check
              _
            $region42: #{deep_up_projection_block.5} parent=35 // pred_check_branch
              %169 = sbr.rel target = $region44
            $region43: #{deep_up_projection_block.5} parent=35 // pred_region
              loop: start=0, step=1, limit=1
              $region45: #{deep_up_projection_block.5} parent=43 // loop_pre_header
                _
              $region46: #{deep_up_projection_block.5} parent=43 // loop_header
                %s172 = sphi 0, %s176
                %p173 = scmp.ge.s32.totalorder %s172, 1
                %s177 = sphi %s163, %s163
                %s178 = sphi %s160, %s160
              $region47: #{deep_up_projection_block.5} parent=43 // loop_header_branch
                %175 = sbr.rel (%p173) target = $region51
              $region48: #{deep_up_projection_block.5} parent=43 // loop_body
                %v179 = vld [vmem:[%s177] sm:$0xff]
                %180 = vst [vmem:[%s178] sm:$0xff] %v179
                %v181 = vld [vmem:[%s177 + $0x10] sm:$0xff]
                %182 = vst [vmem:[%s178 + $0x8] sm:$0xff] %v181
                %v183 = vld [vmem:[%s177 + $0x20] sm:$0xff]
                %184 = vst [vmem:[%s178 + $0x10] sm:$0xff] %v183
                %v185 = vld [vmem:[%s177 + $0x30] sm:$0xff]
                %186 = vst [vmem:[%s178 + $0x18] sm:$0xff] %v185
                %v187 = vld [vmem:[%s177 + $0x40] sm:$0xff]
                %188 = vst [vmem:[%s178 + $0x20] sm:$0xff] %v187
              $region49: #{deep_up_projection_block.5} parent=43 // loop_footer
                %s176 = sadd.s32 1, %s172
              $region50: #{deep_up_projection_block.5} parent=43 // loop_footer_branch
                %171 = sbr.rel target = $region46
              $region51: #{deep_up_projection_block.5} parent=43 // loop_exit
                _
            $region44: #{deep_up_projection_block.5} parent=35 // pred_fallthru
              _
          $region36: #{deep_up_projection_block.5} parent=31 // pred_fallthru
            _
          %211 = vnop
        $region32: #{deep_up_projection_block.5} parent=27 // pred_fallthru
          _
      $region28: #{deep_up_projection_block.5} parent=5 // pred_fallthru
        _
      %p212 = scmp.le.s32.totalorder 1, %s11
      %p213 = scmp.lt.s32.totalorder %s11, 3
      %p214 = pnand %p212, %p213
      %p215 = pneg %p214
      // Predicated region
      $region67: #{deep_up_projection_block.5} parent=5 // pred_check
        _
      $region68: #{deep_up_projection_block.5} parent=5 // pred_check_branch
        %217 = sbr.rel (%p214) target = $region70
      $region69: #{deep_up_projection_block.5} parent=5 // pred_region
        %s218 = ssub.s32 %s11, 1
        %s219 = sand.u32 %s66, 1
        %s220 = sand.u32 %s66, 1
        %s221 = smul.addr %s220, 40
        %s222 = scalar_lea.vmem [#allocation3], %s221
        // Predicated region
        $region71: #{deep_up_projection_block.5} parent=69 // pred_check
          %p223 = pneg %p79
        $region72: #{deep_up_projection_block.5} parent=69 // pred_check_branch
          %225 = sbr.rel (%p223) target = $region74
        $region73: #{deep_up_projection_block.5} parent=69 // pred_region
          _
        $region74: #{deep_up_projection_block.5} parent=69 // pred_fallthru
          _
        %p226 = pneg %p32
        %p227 = pneg %p29
        %p228 = pneg %p53
        %p229 = pneg %p50
        %s230 = sand.u32 %s66, 1
        %s231 = sand.u32 %s66, 1
        %s232 = smul.addr %s231, 40
        %s233 = scalar_lea.vmem [#allocation3], %s232
        %p234 = pneg %p79
        %p235 = pneg %p76
        %p236 = pneg %p100
        %p237 = pneg %p97
        %p238 = pneg %p126
        %p239 = pneg %p123
        %s240 = sand.u32 %s113, 1
        %s241 = sand.u32 %s113, 1
        %s242 = smul.addr %s241, 16
        %s243 = scalar_lea.vmem [#allocation4], %s242
        %s244 = smul.u32 2, %s16
        %s245 = smul.u32 2, %s16
        %v247 = vld [vmem:[%s1] sm:$0xf]
        %v248 = vld [vmem:[%s1 + $0x4] sm:$0xf]
        %v249 = vld [vmem:[%s222] sm:$0xff]
        %v250 = vld [vmem:[%s222 + $0x8] sm:$0xff]
        %v251 = vld [vmem:[%s222 + $0x10] sm:$0xff]
        %v252 = vld [vmem:[%s222 + $0x18] sm:$0xff]
        %v253 = vld [vmem:[%s222 + $0x20] sm:$0x33]
        %v254 = vld [vmem:[%s3] sm:$0xff]
        %v255 = vld [vmem:[%s3 + $0x8] sm:$0xff]
        %257 = vset.pattern.permute.xlu0 0
        %258 = vperm.xlu0 %257, %v254
        %v259 = vpop.permute.xlu0 %258
        %262 = vset.pattern.permute.xlu0 0
        %263 = vperm.xlu0 %262, %v255
        %v264 = vpop.permute.xlu0 %263
        %v268 = vunpack.c.l.b16 %v247
        %v269 = vunpack.c.l.b16 %v248
        %v270 = vpack.c.b16 %v269, %v268
        %v276 = vunpack.c.l.b16 %v249
        %v277 = vunpack.c.h.b16 %v249
        %v278 = vunpack.c.l.b16 %v250
        %v279 = vunpack.c.h.b16 %v250
        %v280 = vunpack.c.l.b16 %v251
        %v281 = vunpack.c.h.b16 %v251
        %v282 = vunpack.c.l.b16 %v252
        %v283 = vunpack.c.h.b16 %v252
        %v284 = vunpack.c.l.b16 %v253
        %v285 = vunpack.c.h.b16 %v253
        %v286 = vpack.c.b16 %v278, %v276
        %v287 = vpack.c.b16 %v279, %v277
        %v288 = vpack.c.b16 %v282, %v280
        %v289 = vpack.c.b16 %v283, %v281
        %v290 = vpack.c.b16 %v284, %v284
        %v291 = vpack.c.b16 %v285, %v285
        %vm296 = vcmask 293888
        %v298 = vsel %vm296, %v270, 0
        %vm300 = vcmask 1041408
        %v302 = vsel %vm300, %v290, 0
        %v305 = vsel %vm300, %v291, 0
        %307 = vmatprep.subr.bf16.mxu0 %v287
        %308 = vmatpush1.bf16.msra.mxu0 %v286
        %309 = vmatprep.subr.bf16.mxu0 %v289
        %310 = vmatpush1.bf16.msra.mxu0 %v288
        %311 = vmatprep.subr.bf16.mxu0 %v305
        %312 = vmatpush1.bf16.msra.mxu0 %v302
        %313 = vmatprep.subr.bf16.mxu0 0
        %314 = vmatpush1.bf16.msra.mxu0 0
        %315 = vmatprep.subr.bf16.mxu0 0
        %316 = vmatpush1.bf16.msra.mxu0 0
        %317 = vmatprep.subr.bf16.mxu0 0
        %318 = vmatpush1.bf16.msra.mxu0 0
        %319 = vmatprep.subr.bf16.mxu0 0
        %320 = vmatpush1.bf16.msra.mxu0 0
        %321 = vmatprep.subr.bf16.mxu0 0
        %322 = vmatpush1.bf16.msra.mxu0 0
        %323 = vmatprep.subr.bf16.mxu0 0
        %324 = vmatpush1.bf16.msra.mxu0 0
        %325 = vmatprep.subr.bf16.mxu0 0
        %326 = vmatpush1.bf16.msra.mxu0 0
        %327 = vmatprep.subr.bf16.mxu0 0
        %328 = vmatpush1.bf16.msra.mxu0 0
        %329 = vmatprep.subr.bf16.mxu0 0
        %330 = vmatpush1.bf16.msra.mxu0 0
        %331 = vmatprep.subr.bf16.mxu0 0
        %332 = vmatpush1.bf16.msra.mxu0 0
        %333 = vmatprep.subr.bf16.mxu0 0
        %334 = vmatpush1.bf16.msra.mxu0 0
        %335 = vmatprep.subr.bf16.mxu0 0
        %336 = vmatpush1.bf16.msra.mxu0 0
        %337 = vmatprep.subr.bf16.mxu0 0
        %338 = vmatpush1.bf16.msra.mxu0 0
        %339 = vmatprep.mubr.bf16.mxu0 0
        %340 = vmatmul.mubr.bf16.gmra.mrb[0].mxu0 %v298
        %v341 = vpop.f32.mrb[0].mxu0
        %v342 = vadd.f32 %v259, %v341
        %v343 = vpop.f32.mrb[0].mxu0
        %v344 = vadd.f32 %v259, %v343
        %v345 = vpop.f32.mrb[0].mxu0
        %v346 = vadd.f32 %v264, %v345
        %v347 = vpop.f32.mrb[0].mxu0
        %v348 = vadd.f32 %v264, %v347
        %349 = vdwg.mxu0
        %s350 = sld [smem:[#allocation2]]
        %vm351 = vcmp.ge.f32.partialorder %v342, 0.0
        %vm352 = vcmp.ge.f32.partialorder %v344, 0.0
        %vm353 = vcmp.ge.f32.partialorder %v346, 0.0
        %vm354 = vcmp.ge.f32.partialorder %v348, 0.0
        %v355 = vstv %s350
        %v356 = vmul.f32 %v355, %v342
        %v357 = vmul.f32 %v355, %v344
        %v358 = vmul.f32 %v355, %v346
        %v359 = vmul.f32 %v355, %v348
        %v360 = vsel %vm351, %v342, %v356
        %v361 = vsel %vm352, %v344, %v357
        %v362 = vsel %vm353, %v346, %v358
        %v363 = vsel %vm354, %v348, %v359
        %v364 = vpack.c.bf16 %v362, %v360
        %v365 = vpack.c.bf16 %v363, %v361
        %v368 = vunpack.c.l.b16 %v364
        %v369 = vunpack.c.l.b16 %v365
        %v370 = vunpack.c.h.b16 %v364
        %v371 = vunpack.c.h.b16 %v365
        %v372 = vpack.c.b16 %v369, %v368
        %v373 = vpack.c.b16 %v371, %v370
        %376 = vst [vmem:[%s243] sm:$0xff] %v372
        %377 = vst [vmem:[%s243 + $0x8] sm:$0xff] %v373
        %s378 = sand.u32 %s113, 1
        %s379 = sand.u32 %s113, 1
        %s380 = smul.addr %s379, 16
        %s381 = scalar_lea.vmem [#allocation4], %s380
        // Predicated region
        $region75: #{deep_up_projection_block.5} parent=69 // pred_check
          %p382 = pneg %p123
        $region76: #{deep_up_projection_block.5} parent=69 // pred_check_branch
          %384 = sbr.rel (%p382) target = $region78
        $region77: #{deep_up_projection_block.5} parent=69 // pred_region
          %s385 = smul.u32 2, %s16
          %s386 = smul.addr %s385, 4
          %s387 = scalar_lea.vmem %s4, %s386
          // Predicated region
          $region79: #{deep_up_projection_block.5} parent=77 // pred_check
            _
          $region80: #{deep_up_projection_block.5} parent=77 // pred_check_branch
            %389 = sbr.rel (0) target = $region82
          $region81: #{deep_up_projection_block.5} parent=77 // pred_region
            // Predicated region
            $region83: #{deep_up_projection_block.5} parent=81 // pred_check
              _
            $region84: #{deep_up_projection_block.5} parent=81 // pred_check_branch
              %391 = sbr.rel (0) target = $region86
            $region85: #{deep_up_projection_block.5} parent=81 // pred_region
              // Predicated region
              $region98: #{deep_up_projection_block.5} parent=85 // pred_check
                _
              $region99: #{deep_up_projection_block.5} parent=85 // pred_check_branch
                %408 = sbr.rel (0) target = $region101
              $region100: #{deep_up_projection_block.5} parent=85 // pred_region
                loop: start=0, step=1, limit=1
                $region102: #{deep_up_projection_block.5} parent=100 // loop_pre_header
                  _
                $region103: #{deep_up_projection_block.5} parent=100 // loop_header
                  %s410 = sphi 0, %s414
                  %p411 = scmp.ge.s32.totalorder %s410, 1
                  %s415 = sphi %s381, %s381
                  %s416 = sphi %s387, %s387
                $region104: #{deep_up_projection_block.5} parent=100 // loop_header_branch
                  %413 = sbr.rel (%p411) target = $region108
                $region105: #{deep_up_projection_block.5} parent=100 // loop_body
                  %v417 = vld [vmem:[%s415] sm:$0xff]
                  %418 = vst [vmem:[%s416] sm:$0xff] %v417
                  %v419 = vld [vmem:[%s415 + $0x8] sm:$0xff]
                  %420 = vst [vmem:[%s416 + $0x10] sm:$0xff] %v419
                $region106: #{deep_up_projection_block.5} parent=100 // loop_footer
                  %s414 = sadd.s32 1, %s410
                $region107: #{deep_up_projection_block.5} parent=100 // loop_footer_branch
                  %409 = sbr.rel target = $region103
                $region108: #{deep_up_projection_block.5} parent=100 // loop_exit
                  _
              $region101: #{deep_up_projection_block.5} parent=85 // pred_fallthru
                _
              // Predicated region
              $region109: #{deep_up_projection_block.5} parent=85 // pred_check
                _
              $region110: #{deep_up_projection_block.5} parent=85 // pred_check_branch
                %422 = sbr.rel target = $region112
              $region111: #{deep_up_projection_block.5} parent=85 // pred_region
                _
              $region112: #{deep_up_projection_block.5} parent=85 // pred_fallthru
                _
            $region86: #{deep_up_projection_block.5} parent=81 // pred_fallthru
              _
            // Predicated region
            $region87: #{deep_up_projection_block.5} parent=81 // pred_check
              _
            $region88: #{deep_up_projection_block.5} parent=81 // pred_check_branch
              %393 = sbr.rel target = $region90
            $region89: #{deep_up_projection_block.5} parent=81 // pred_region
              loop: start=0, step=1, limit=1
              $region91: #{deep_up_projection_block.5} parent=89 // loop_pre_header
                _
              $region92: #{deep_up_projection_block.5} parent=89 // loop_header
                %s396 = sphi 0, %s400
                %p397 = scmp.ge.s32.totalorder %s396, 1
                %s401 = sphi %s381, %s381
                %s402 = sphi %s387, %s387
              $region93: #{deep_up_projection_block.5} parent=89 // loop_header_branch
                %399 = sbr.rel (%p397) target = $region97
              $region94: #{deep_up_projection_block.5} parent=89 // loop_body
                %v403 = vld [vmem:[%s401] sm:$0xff]
                %404 = vst [vmem:[%s402] sm:$0xff] %v403
                %v405 = vld [vmem:[%s401 + $0x8] sm:$0xff]
                %406 = vst [vmem:[%s402 + $0x10] sm:$0xff] %v405
              $region95: #{deep_up_projection_block.5} parent=89 // loop_footer
                %s400 = sadd.s32 1, %s396
              $region96: #{deep_up_projection_block.5} parent=89 // loop_footer_branch
                %395 = sbr.rel target = $region92
              $region97: #{deep_up_projection_block.5} parent=89 // loop_exit
                _
            $region90: #{deep_up_projection_block.5} parent=81 // pred_fallthru
              _
          $region82: #{deep_up_projection_block.5} parent=77 // pred_fallthru
            _
          %423 = vnop
        $region78: #{deep_up_projection_block.5} parent=69 // pred_fallthru
          _
      $region70: #{deep_up_projection_block.5} parent=5 // pred_fallthru
        _
      %p424 = scmp.le.s32.totalorder 2, %s11
      // Predicated region
      $region113: #{deep_up_projection_block.5} parent=5 // pred_check
        %p425 = pneg %p424
      $region114: #{deep_up_projection_block.5} parent=5 // pred_check_branch
        %427 = sbr.rel (%p425) target = $region116
      $region115: #{deep_up_projection_block.5} parent=5 // pred_region
        %s428 = ssub.s32 %s11, 2
        // Predicated region
        $region117: #{deep_up_projection_block.5} parent=115 // pred_check
          %p429 = pneg %p129
        $region118: #{deep_up_projection_block.5} parent=115 // pred_check_branch
          %431 = sbr.rel (%p429) target = $region120
        $region119: #{deep_up_projection_block.5} parent=115 // pred_region
          %s432 = sand.u32 %s114, 1
          %s433 = sand.u32 %s114, 1
          %s434 = smul.addr %s433, 16
          %s435 = scalar_lea.vmem [#allocation4], %s434
        $region120: #{deep_up_projection_block.5} parent=115 // pred_fallthru
          _
      $region116: #{deep_up_projection_block.5} parent=5 // pred_fallthru
        _
    $region6: #{deep_up_projection_block.5} parent=1 // loop_footer
      %s15 = sadd.s32 1, %s11
    $region7: #{deep_up_projection_block.5} parent=1 // loop_footer_branch
      %10 = sbr.rel target = $region3
    $region8: #{deep_up_projection_block.5} parent=1 // loop_exit
      _

// kernel: deep_up_projection_block.7
$region0: #{deep_up_projection_block.7}
  #allocation0 [shape = 'u32[]', space=smem, size = 0x4, offset = 0x4, fixed_abs, tag = 'smem constant byte address 0x4 - core index']
  #allocation1 [shape = 'u32[144,128]{1,0:T(1,128)}', space=vmem, size = 0x12000, scoped, tag = 'internal scratch']
  #allocation2 [shape = 'f32[1]{0:T(128)S(6)}', space=smem, size = 0x200, scoped, tag = 'scoped memory for deep_up_projection_block.7']
  %s0 = inlined_call_operand.<no memory space> [shape: f32[1], index: 0, kind: input, shape index: {}]
  %s1 = inlined_call_operand.vmem [shape: bf16[16,36], index: 1, kind: input, shape index: {}]
  %s2 = inlined_call_operand.vmem [shape: bf16[36,512], index: 2, kind: input, shape index: {}]
  %s3 = inlined_call_operand.vmem [shape: f32[16,1], index: 3, kind: input, shape index: {}]
  %s4 = inlined_call_operand.vmem [shape: bf16[16,512], index: 4, kind: input, shape index: {}]
  %s5 = inlined_call_operand.vmem [shape: f32[16,512], index: 5, kind: output, shape index: {}]
  %s6 = sld [smem:[#allocation0]]
  $region148: #{deep_up_projection_block.7} parent=0
    _
  %s8 = ssub.s32 1, %s6
  %s9 = scalar_select 0, %s8, %s6
  %10 = sst [smem:[#allocation2]] %s0
  $region1: #{deep_up_projection_block.7} parent=0
    #allocation3 [shape = 'u8[40960]{0}', space=vmem, size = 0xa000, scoped, tag = 'input window, operand 2']
    #allocation4 [shape = 'u8[16384]{0}', space=vmem, size = 0x4000, scoped, tag = 'input window, operand 4']
    #allocation5 [shape = 'u8[32768]{0}', space=vmem, size = 0x8000, scoped, tag = 'output window, operand 0']
    loop: start=0, step=1, limit=4
    $region2: #{deep_up_projection_block.7} parent=1 // loop_pre_header
      _
    $region3: #{deep_up_projection_block.7} parent=1 // loop_header
      %s12 = sphi 0, %s16
      %p13 = scmp.ge.s32.totalorder %s12, 4
      %s20 = sphi 0, %s20
      %s22 = sphi 0, %s20
      %s23 = sphi 0, %s22
      %s37 = sphi 0, %s23
      %s41 = sphi 0, %s41
      %s43 = sphi 0, %s41
      %s44 = sphi 0, %s43
      %s58 = sphi 0, %s44
      %s64 = sphi 0, %s66
      %s67 = sphi 0, %s64
      %s68 = sphi 0, %s67
      %s84 = sphi 0, %s68
      %s88 = sphi 0, %s88
      %s90 = sphi 0, %s88
      %s91 = sphi 0, %s90
      %s105 = sphi 0, %s91
      %s111 = sphi 0, %s113
      %s114 = sphi 0, %s111
      %s115 = sphi 0, %s114
      %s131 = sphi 0, %s115
      %s137 = sphi 0, %s139
      %s140 = sphi 0, %s137
      %s141 = sphi 0, %s140
      %s157 = sphi 0, %s141
    $region4: #{deep_up_projection_block.7} parent=1 // loop_header_branch
      %15 = sbr.rel (%p13) target = $region8
    $region5: #{deep_up_projection_block.7} parent=1 // loop_body
      %s17 = ssub.s32 %s12, 1
      %s18 = ssub.s32 %s12, 2
      %s19 = sadd.s32 %s12, 1
      %s21 = sadd.s32 %s20, 1
      %p24 = scmp.eq.s32.totalorder %s12, 1
      %p25 = scmp.ne.s32.totalorder %s20, %s22
      %p26 = scmp.eq.s32.totalorder %s12, 0
      %p27 = por %p25, %p26
      %p28 = scmp.ne.s32.totalorder %s20, %s22
      %p29 = scmp.eq.s32.totalorder %s17, 1
      %p30 = por %p28, %p29
      %p31 = scmp.ne.s32.totalorder %s22, %s23
      %p32 = scmp.eq.s32.totalorder %s17, 0
      %p33 = por %p31, %p32
      %p34 = scmp.ne.s32.totalorder %s22, %s23
      %p35 = scmp.eq.s32.totalorder %s18, 1
      %p36 = por %p34, %p35
      %p38 = scmp.ne.s32.totalorder %s23, %s37
      %p39 = scmp.eq.s32.totalorder %s18, 0
      %p40 = por %p38, %p39
      %s42 = sadd.s32 %s41, 1
      %p45 = scmp.eq.s32.totalorder %s12, 1
      %p46 = scmp.ne.s32.totalorder %s41, %s43
      %p47 = scmp.eq.s32.totalorder %s12, 0
      %p48 = por %p46, %p47
      %p49 = scmp.ne.s32.totalorder %s41, %s43
      %p50 = scmp.eq.s32.totalorder %s17, 1
      %p51 = por %p49, %p50
      %p52 = scmp.ne.s32.totalorder %s43, %s44
      %p53 = scmp.eq.s32.totalorder %s17, 0
      %p54 = por %p52, %p53
      %p55 = scmp.ne.s32.totalorder %s43, %s44
      %p56 = scmp.eq.s32.totalorder %s18, 1
      %p57 = por %p55, %p56
      %p59 = scmp.ne.s32.totalorder %s44, %s58
      %p60 = scmp.eq.s32.totalorder %s18, 0
      %p61 = por %p59, %p60
      %s62 = ssub.s32 %s12, %s19
      %p63 = scmp.eq.s32.totalorder %s62, 0
      %s65 = sadd.s32 %s64, 1
      %s66 = scalar_select %p63, %s64, %s65
      %p69 = pneg %p63
      %p70 = scmp.eq.s32.totalorder %s12, 1
      %p71 = por %p69, %p70
      %p72 = scmp.ne.s32.totalorder %s64, %s67
      %p73 = scmp.eq.s32.totalorder %s12, 0
      %p74 = por %p72, %p73
      %p75 = scmp.ne.s32.totalorder %s64, %s67
      %p76 = scmp.eq.s32.totalorder %s17, 1
      %p77 = por %p75, %p76
      %p78 = scmp.ne.s32.totalorder %s67, %s68
      %p79 = scmp.eq.s32.totalorder %s17, 0
      %p80 = por %p78, %p79
      %p81 = scmp.ne.s32.totalorder %s67, %s68
      %p82 = scmp.eq.s32.totalorder %s18, 1
      %p83 = por %p81, %p82
      %p85 = scmp.ne.s32.totalorder %s68, %s84
      %p86 = scmp.eq.s32.totalorder %s18, 0
      %p87 = por %p85, %p86
      %s89 = sadd.s32 %s88, 1
      %p92 = scmp.eq.s32.totalorder %s12, 1
      %p93 = scmp.ne.s32.totalorder %s88, %s90
      %p94 = scmp.eq.s32.totalorder %s12, 0
      %p95 = por %p93, %p94
      %p96 = scmp.ne.s32.totalorder %s88, %s90
      %p97 = scmp.eq.s32.totalorder %s17, 1
      %p98 = por %p96, %p97
      %p99 = scmp.ne.s32.totalorder %s90, %s91
      %p100 = scmp.eq.s32.totalorder %s17, 0
      %p101 = por %p99, %p100
      %p102 = scmp.ne.s32.totalorder %s90, %s91
      %p103 = scmp.eq.s32.totalorder %s18, 1
      %p104 = por %p102, %p103
      %p106 = scmp.ne.s32.totalorder %s91, %s105
      %p107 = scmp.eq.s32.totalorder %s18, 0
      %p108 = por %p106, %p107
      %s109 = ssub.s32 %s12, %s19
      %p110 = scmp.eq.s32.totalorder %s109, 0
      %s112 = sadd.s32 %s111, 1
      %s113 = scalar_select %p110, %s111, %s112
      %p116 = pneg %p110
      %p117 = scmp.eq.s32.totalorder %s12, 1
      %p118 = por %p116, %p117
      %p119 = scmp.ne.s32.totalorder %s111, %s114
      %p120 = scmp.eq.s32.totalorder %s12, 0
      %p121 = por %p119, %p120
      %p122 = scmp.ne.s32.totalorder %s111, %s114
      %p123 = scmp.eq.s32.totalorder %s17, 1
      %p124 = por %p122, %p123
      %p125 = scmp.ne.s32.totalorder %s114, %s115
      %p126 = scmp.eq.s32.totalorder %s17, 0
      %p127 = por %p125, %p126
      %p128 = scmp.ne.s32.totalorder %s114, %s115
      %p129 = scmp.eq.s32.totalorder %s18, 1
      %p130 = por %p128, %p129
      %p132 = scmp.ne.s32.totalorder %s115, %s131
      %p133 = scmp.eq.s32.totalorder %s18, 0
      %p134 = por %p132, %p133
      %s135 = ssub.s32 %s12, %s19
      %p136 = scmp.eq.s32.totalorder %s135, 0
      %s138 = sadd.s32 %s137, 1
      %s139 = scalar_select %p136, %s137, %s138
      %p142 = pneg %p136
      %p143 = scmp.eq.s32.totalorder %s12, 1
      %p144 = por %p142, %p143
      %p145 = scmp.ne.s32.totalorder %s137, %s140
      %p146 = scmp.eq.s32.totalorder %s12, 0
      %p147 = por %p145, %p146
      %p148 = scmp.ne.s32.totalorder %s137, %s140
      %p149 = scmp.eq.s32.totalorder %s17, 1
      %p150 = por %p148, %p149
      %p151 = scmp.ne.s32.totalorder %s140, %s141
      %p152 = scmp.eq.s32.totalorder %s17, 0
      %p153 = por %p151, %p152
      %p154 = scmp.ne.s32.totalorder %s140, %s141
      %p155 = scmp.eq.s32.totalorder %s18, 1
      %p156 = por %p154, %p155
      %p158 = scmp.ne.s32.totalorder %s141, %s157
      %p159 = scmp.eq.s32.totalorder %s18, 0
      %p160 = por %p158, %p159
      %p161 = scmp.le.s32.totalorder 1, %s12
      %p162 = scmp.lt.s32.totalorder %s12, 3
      %p163 = pnand %p161, %p162
      %p164 = pneg %p163
      // Predicated region
      $region9: #{deep_up_projection_block.7} parent=5 // pred_check
        _
      $region10: #{deep_up_projection_block.7} parent=5 // pred_check_branch
        %166 = sbr.rel (%p163) target = $region12
      $region11: #{deep_up_projection_block.7} parent=5 // pred_region
        %s167 = ssub.s32 %s12, 1
        // Predicated region
        $region13: #{deep_up_projection_block.7} parent=11 // pred_check
          %p168 = pneg %p33
        $region14: #{deep_up_projection_block.7} parent=11 // pred_check_branch
          %170 = sbr.rel (%p168) target = $region16
        $region15: #{deep_up_projection_block.7} parent=11 // pred_region
          _
        $region16: #{deep_up_projection_block.7} parent=11 // pred_fallthru
          _
        // Predicated region
        $region17: #{deep_up_projection_block.7} parent=11 // pred_check
          %p171 = pneg %p54
        $region18: #{deep_up_projection_block.7} parent=11 // pred_check_branch
          %173 = sbr.rel (%p171) target = $region20
        $region19: #{deep_up_projection_block.7} parent=11 // pred_region
          _
        $region20: #{deep_up_projection_block.7} parent=11 // pred_fallthru
          _
        // Predicated region
        $region21: #{deep_up_projection_block.7} parent=11 // pred_check
          %p174 = pneg %p101
        $region22: #{deep_up_projection_block.7} parent=11 // pred_check_branch
          %176 = sbr.rel (%p174) target = $region24
        $region23: #{deep_up_projection_block.7} parent=11 // pred_region
          _
        $region24: #{deep_up_projection_block.7} parent=11 // pred_fallthru
          _
      $region12: #{deep_up_projection_block.7} parent=5 // pred_fallthru
        _
      %p177 = scmp.lt.s32.totalorder %s12, 2
      // Predicated region
      $region25: #{deep_up_projection_block.7} parent=5 // pred_check
        %p178 = pneg %p177
      $region26: #{deep_up_projection_block.7} parent=5 // pred_check_branch
        %180 = sbr.rel (%p178) target = $region28
      $region27: #{deep_up_projection_block.7} parent=5 // pred_region
        // Predicated region
        $region29: #{deep_up_projection_block.7} parent=27 // pred_check
          %p181 = pneg %p74
        $region30: #{deep_up_projection_block.7} parent=27 // pred_check_branch
          %183 = sbr.rel (%p181) target = $region32
        $region31: #{deep_up_projection_block.7} parent=27 // pred_region
          %s184 = sand.u32 %s64, 1
          %s185 = sand.u32 %s64, 1
          %s186 = smul.addr %s185, 40
          %s187 = scalar_lea.vmem [#allocation3], %s186
          %s188 = smul.u32 2, %s12
          %s189 = smul.addr %s188, 4
          %s190 = scalar_lea.vmem %s2, %s189
          // Predicated region
          $region33: #{deep_up_projection_block.7} parent=31 // pred_check
            _
          $region34: #{deep_up_projection_block.7} parent=31 // pred_check_branch
            %192 = sbr.rel (0) target = $region36
          $region35: #{deep_up_projection_block.7} parent=31 // pred_region
            // Predicated region
            $region37: #{deep_up_projection_block.7} parent=35 // pred_check
              _
            $region38: #{deep_up_projection_block.7} parent=35 // pred_check_branch
              %194 = sbr.rel (0) target = $region40
            $region39: #{deep_up_projection_block.7} parent=35 // pred_region
              // Predicated region
              $region52: #{deep_up_projection_block.7} parent=39 // pred_check
                _
              $region53: #{deep_up_projection_block.7} parent=39 // pred_check_branch
                %217 = sbr.rel (0) target = $region55
              $region54: #{deep_up_projection_block.7} parent=39 // pred_region
                loop: start=0, step=1, limit=1
                $region56: #{deep_up_projection_block.7} parent=54 // loop_pre_header
                  _
                $region57: #{deep_up_projection_block.7} parent=54 // loop_header
                  %s219 = sphi 0, %s223
                  %p220 = scmp.ge.s32.totalorder %s219, 1
                  %s224 = sphi %s190, %s190
                  %s225 = sphi %s187, %s187
                $region58: #{deep_up_projection_block.7} parent=54 // loop_header_branch
                  %222 = sbr.rel (%p220) target = $region62
                $region59: #{deep_up_projection_block.7} parent=54 // loop_body
                  %v226 = vld [vmem:[%s224] sm:$0xff]
                  %227 = vst [vmem:[%s225] sm:$0xff] %v226
                  %v228 = vld [vmem:[%s224 + $0x10] sm:$0xff]
                  %229 = vst [vmem:[%s225 + $0x8] sm:$0xff] %v228
                  %v230 = vld [vmem:[%s224 + $0x20] sm:$0xff]
                  %231 = vst [vmem:[%s225 + $0x10] sm:$0xff] %v230
                  %v232 = vld [vmem:[%s224 + $0x30] sm:$0xff]
                  %233 = vst [vmem:[%s225 + $0x18] sm:$0xff] %v232
                  %v234 = vld [vmem:[%s224 + $0x40] sm:$0xff]
                  %235 = vst [vmem:[%s225 + $0x20] sm:$0xff] %v234
                $region60: #{deep_up_projection_block.7} parent=54 // loop_footer
                  %s223 = sadd.s32 1, %s219
                $region61: #{deep_up_projection_block.7} parent=54 // loop_footer_branch
                  %218 = sbr.rel target = $region57
                $region62: #{deep_up_projection_block.7} parent=54 // loop_exit
                  _
              $region55: #{deep_up_projection_block.7} parent=39 // pred_fallthru
                _
              // Predicated region
              $region63: #{deep_up_projection_block.7} parent=39 // pred_check
                _
              $region64: #{deep_up_projection_block.7} parent=39 // pred_check_branch
                %237 = sbr.rel target = $region66
              $region65: #{deep_up_projection_block.7} parent=39 // pred_region
                _
              $region66: #{deep_up_projection_block.7} parent=39 // pred_fallthru
                _
            $region40: #{deep_up_projection_block.7} parent=35 // pred_fallthru
              _
            // Predicated region
            $region41: #{deep_up_projection_block.7} parent=35 // pred_check
              _
            $region42: #{deep_up_projection_block.7} parent=35 // pred_check_branch
              %196 = sbr.rel target = $region44
            $region43: #{deep_up_projection_block.7} parent=35 // pred_region
              loop: start=0, step=1, limit=1
              $region45: #{deep_up_projection_block.7} parent=43 // loop_pre_header
                _
              $region46: #{deep_up_projection_block.7} parent=43 // loop_header
                %s199 = sphi 0, %s203
                %p200 = scmp.ge.s32.totalorder %s199, 1
                %s204 = sphi %s190, %s190
                %s205 = sphi %s187, %s187
              $region47: #{deep_up_projection_block.7} parent=43 // loop_header_branch
                %202 = sbr.rel (%p200) target = $region51
              $region48: #{deep_up_projection_block.7} parent=43 // loop_body
                %v206 = vld [vmem:[%s204] sm:$0xff]
                %207 = vst [vmem:[%s205] sm:$0xff] %v206
                %v208 = vld [vmem:[%s204 + $0x10] sm:$0xff]
                %209 = vst [vmem:[%s205 + $0x8] sm:$0xff] %v208
                %v210 = vld [vmem:[%s204 + $0x20] sm:$0xff]
                %211 = vst [vmem:[%s205 + $0x10] sm:$0xff] %v210
                %v212 = vld [vmem:[%s204 + $0x30] sm:$0xff]
                %213 = vst [vmem:[%s205 + $0x18] sm:$0xff] %v212
                %v214 = vld [vmem:[%s204 + $0x40] sm:$0xff]
                %215 = vst [vmem:[%s205 + $0x20] sm:$0xff] %v214
              $region49: #{deep_up_projection_block.7} parent=43 // loop_footer
                %s203 = sadd.s32 1, %s199
              $region50: #{deep_up_projection_block.7} parent=43 // loop_footer_branch
                %198 = sbr.rel target = $region46
              $region51: #{deep_up_projection_block.7} parent=43 // loop_exit
                _
            $region44: #{deep_up_projection_block.7} parent=35 // pred_fallthru
              _
          $region36: #{deep_up_projection_block.7} parent=31 // pred_fallthru
            _
          %238 = vnop
        $region32: #{deep_up_projection_block.7} parent=27 // pred_fallthru
          _
        // Predicated region
        $region67: #{deep_up_projection_block.7} parent=27 // pred_check
          %p239 = pneg %p121
        $region68: #{deep_up_projection_block.7} parent=27 // pred_check_branch
          %241 = sbr.rel (%p239) target = $region70
        $region69: #{deep_up_projection_block.7} parent=27 // pred_region
          %s242 = sand.u32 %s111, 1
          %s243 = sand.u32 %s111, 1
          %s244 = smul.addr %s243, 16
          %s245 = scalar_lea.vmem [#allocation4], %s244
          %s246 = smul.u32 2, %s12
          %s247 = smul.addr %s246, 4
          %s248 = scalar_lea.vmem %s4, %s247
          // Predicated region
          $region71: #{deep_up_projection_block.7} parent=69 // pred_check
            _
          $region72: #{deep_up_projection_block.7} parent=69 // pred_check_branch
            %250 = sbr.rel (0) target = $region74
          $region73: #{deep_up_projection_block.7} parent=69 // pred_region
            // Predicated region
            $region75: #{deep_up_projection_block.7} parent=73 // pred_check
              _
            $region76: #{deep_up_projection_block.7} parent=73 // pred_check_branch
              %252 = sbr.rel (0) target = $region78
            $region77: #{deep_up_projection_block.7} parent=73 // pred_region
              // Predicated region
              $region90: #{deep_up_projection_block.7} parent=77 // pred_check
                _
              $region91: #{deep_up_projection_block.7} parent=77 // pred_check_branch
                %269 = sbr.rel (0) target = $region93
              $region92: #{deep_up_projection_block.7} parent=77 // pred_region
                loop: start=0, step=1, limit=1
                $region94: #{deep_up_projection_block.7} parent=92 // loop_pre_header
                  _
                $region95: #{deep_up_projection_block.7} parent=92 // loop_header
                  %s271 = sphi 0, %s275
                  %p272 = scmp.ge.s32.totalorder %s271, 1
                  %s276 = sphi %s248, %s248
                  %s277 = sphi %s245, %s245
                $region96: #{deep_up_projection_block.7} parent=92 // loop_header_branch
                  %274 = sbr.rel (%p272) target = $region100
                $region97: #{deep_up_projection_block.7} parent=92 // loop_body
                  %v278 = vld [vmem:[%s276] sm:$0xff]
                  %279 = vst [vmem:[%s277] sm:$0xff] %v278
                  %v280 = vld [vmem:[%s276 + $0x10] sm:$0xff]
                  %281 = vst [vmem:[%s277 + $0x8] sm:$0xff] %v280
                $region98: #{deep_up_projection_block.7} parent=92 // loop_footer
                  %s275 = sadd.s32 1, %s271
                $region99: #{deep_up_projection_block.7} parent=92 // loop_footer_branch
                  %270 = sbr.rel target = $region95
                $region100: #{deep_up_projection_block.7} parent=92 // loop_exit
                  _
              $region93: #{deep_up_projection_block.7} parent=77 // pred_fallthru
                _
              // Predicated region
              $region101: #{deep_up_projection_block.7} parent=77 // pred_check
                _
              $region102: #{deep_up_projection_block.7} parent=77 // pred_check_branch
                %283 = sbr.rel target = $region104
              $region103: #{deep_up_projection_block.7} parent=77 // pred_region
                _
              $region104: #{deep_up_projection_block.7} parent=77 // pred_fallthru
                _
            $region78: #{deep_up_projection_block.7} parent=73 // pred_fallthru
              _
            // Predicated region
            $region79: #{deep_up_projection_block.7} parent=73 // pred_check
              _
            $region80: #{deep_up_projection_block.7} parent=73 // pred_check_branch
              %254 = sbr.rel target = $region82
            $region81: #{deep_up_projection_block.7} parent=73 // pred_region
              loop: start=0, step=1, limit=1
              $region83: #{deep_up_projection_block.7} parent=81 // loop_pre_header
                _
              $region84: #{deep_up_projection_block.7} parent=81 // loop_header
                %s257 = sphi 0, %s261
                %p258 = scmp.ge.s32.totalorder %s257, 1
                %s262 = sphi %s248, %s248
                %s263 = sphi %s245, %s245
              $region85: #{deep_up_projection_block.7} parent=81 // loop_header_branch
                %260 = sbr.rel (%p258) target = $region89
              $region86: #{deep_up_projection_block.7} parent=81 // loop_body
                %v264 = vld [vmem:[%s262] sm:$0xff]
                %265 = vst [vmem:[%s263] sm:$0xff] %v264
                %v266 = vld [vmem:[%s262 + $0x10] sm:$0xff]
                %267 = vst [vmem:[%s263 + $0x8] sm:$0xff] %v266
              $region87: #{deep_up_projection_block.7} parent=81 // loop_footer
                %s261 = sadd.s32 1, %s257
              $region88: #{deep_up_projection_block.7} parent=81 // loop_footer_branch
                %256 = sbr.rel target = $region84
              $region89: #{deep_up_projection_block.7} parent=81 // loop_exit
                _
            $region82: #{deep_up_projection_block.7} parent=73 // pred_fallthru
              _
          $region74: #{deep_up_projection_block.7} parent=69 // pred_fallthru
            _
          %284 = vnop
        $region70: #{deep_up_projection_block.7} parent=27 // pred_fallthru
          _
      $region28: #{deep_up_projection_block.7} parent=5 // pred_fallthru
        _
      %p285 = scmp.le.s32.totalorder 1, %s12
      %p286 = scmp.lt.s32.totalorder %s12, 3
      %p287 = pnand %p285, %p286
      %p288 = pneg %p287
      // Predicated region
      $region105: #{deep_up_projection_block.7} parent=5 // pred_check
        _
      $region106: #{deep_up_projection_block.7} parent=5 // pred_check_branch
        %290 = sbr.rel (%p287) target = $region108
      $region107: #{deep_up_projection_block.7} parent=5 // pred_region
        %s291 = ssub.s32 %s12, 1
        %s292 = sand.u32 %s67, 1
        %s293 = sand.u32 %s67, 1
        %s294 = smul.addr %s293, 40
        %s295 = scalar_lea.vmem [#allocation3], %s294
        // Predicated region
        $region109: #{deep_up_projection_block.7} parent=107 // pred_check
          %p296 = pneg %p80
        $region110: #{deep_up_projection_block.7} parent=107 // pred_check_branch
          %298 = sbr.rel (%p296) target = $region112
        $region111: #{deep_up_projection_block.7} parent=107 // pred_region
          _
        $region112: #{deep_up_projection_block.7} parent=107 // pred_fallthru
          _
        %s299 = sand.u32 %s114, 1
        %s300 = sand.u32 %s114, 1
        %s301 = smul.addr %s300, 16
        %s302 = scalar_lea.vmem [#allocation4], %s301
        // Predicated region
        $region113: #{deep_up_projection_block.7} parent=107 // pred_check
          %p303 = pneg %p127
        $region114: #{deep_up_projection_block.7} parent=107 // pred_check_branch
          %305 = sbr.rel (%p303) target = $region116
        $region115: #{deep_up_projection_block.7} parent=107 // pred_region
          _
        $region116: #{deep_up_projection_block.7} parent=107 // pred_fallthru
          _
        %p306 = pneg %p33
        %p307 = pneg %p30
        %p308 = pneg %p54
        %p309 = pneg %p51
        %s310 = sand.u32 %s67, 1
        %s311 = sand.u32 %s67, 1
        %s312 = smul.addr %s311, 40
        %s313 = scalar_lea.vmem [#allocation3], %s312
        %p314 = pneg %p80
        %p315 = pneg %p77
        %p316 = pneg %p101
        %p317 = pneg %p98
        %s318 = sand.u32 %s114, 1
        %s319 = sand.u32 %s114, 1
        %s320 = smul.addr %s319, 16
        %s321 = scalar_lea.vmem [#allocation4], %s320
        %p322 = pneg %p127
        %p323 = pneg %p124
        %p324 = pneg %p153
        %p325 = pneg %p150
        %s326 = sand.u32 %s140, 1
        %s327 = sand.u32 %s140, 1
        %s328 = smul.addr %s327, 32
        %s329 = scalar_lea.vmem [#allocation5], %s328
        %s330 = smul.u32 2, %s17
        %s331 = smul.u32 2, %s17
        %s332 = smul.u32 2, %s17
        %v334 = vld [vmem:[%s1] sm:$0xf]
        %v335 = vld [vmem:[%s1 + $0x4] sm:$0xf]
        %v336 = vld [vmem:[%s295] sm:$0xff]
        %v337 = vld [vmem:[%s295 + $0x8] sm:$0xff]
        %v338 = vld [vmem:[%s295 + $0x10] sm:$0xff]
        %v339 = vld [vmem:[%s295 + $0x18] sm:$0xff]
        %v340 = vld [vmem:[%s295 + $0x20] sm:$0x33]
        %v341 = vld [vmem:[%s3] sm:$0xff]
        %v342 = vld [vmem:[%s3 + $0x8] sm:$0xff]
        %344 = vset.pattern.permute.xlu0 0
        %345 = vperm.xlu0 %344, %v341
        %v346 = vpop.permute.xlu0 %345
        %349 = vset.pattern.permute.xlu0 0
        %350 = vperm.xlu0 %349, %v342
        %v351 = vpop.permute.xlu0 %350
        %v355 = vunpack.c.l.b16 %v334
        %v356 = vunpack.c.l.b16 %v335
        %v357 = vpack.c.b16 %v356, %v355
        %v363 = vunpack.c.l.b16 %v336
        %v364 = vunpack.c.h.b16 %v336
        %v365 = vunpack.c.l.b16 %v337
        %v366 = vunpack.c.h.b16 %v337
        %v367 = vunpack.c.l.b16 %v338
        %v368 = vunpack.c.h.b16 %v338
        %v369 = vunpack.c.l.b16 %v339
        %v370 = vunpack.c.h.b16 %v339
        %v371 = vunpack.c.l.b16 %v340
        %v372 = vunpack.c.h.b16 %v340
        %v373 = vpack.c.b16 %v365, %v363
        %v374 = vpack.c.b16 %v366, %v364
        %v375 = vpack.c.b16 %v369, %v367
        %v376 = vpack.c.b16 %v370, %v368
        %v377 = vpack.c.b16 %v371, %v371
        %v378 = vpack.c.b16 %v372, %v372
        %vm383 = vcmask 293888
        %v385 = vsel %vm383, %v357, 0
        %vm387 = vcmask 1041408
        %v389 = vsel %vm387, %v377, 0
        %v392 = vsel %vm387, %v378, 0
        %394 = vmatprep.subr.bf16.mxu0 %v374
        %395 = vmatpush1.bf16.msra.mxu0 %v373
        %396 = vmatprep.subr.bf16.mxu0 %v376
        %397 = vmatpush1.bf16.msra.mxu0 %v375
        %398 = vmatprep.subr.bf16.mxu0 %v392
        %399 = vmatpush1.bf16.msra.mxu0 %v389
        %400 = vmatprep.subr.bf16.mxu0 0
        %401 = vmatpush1.bf16.msra.mxu0 0
        %402 = vmatprep.subr.bf16.mxu0 0
        %403 = vmatpush1.bf16.msra.mxu0 0
        %404 = vmatprep.subr.bf16.mxu0 0
        %405 = vmatpush1.bf16.msra.mxu0 0
        %406 = vmatprep.subr.bf16.mxu0 0
        %407 = vmatpush1.bf16.msra.mxu0 0
        %408 = vmatprep.subr.bf16.mxu0 0
        %409 = vmatpush1.bf16.msra.mxu0 0
        %410 = vmatprep.subr.bf16.mxu0 0
        %411 = vmatpush1.bf16.msra.mxu0 0
        %412 = vmatprep.subr.bf16.mxu0 0
        %413 = vmatpush1.bf16.msra.mxu0 0
        %414 = vmatprep.subr.bf16.mxu0 0
        %415 = vmatpush1.bf16.msra.mxu0 0
        %416 = vmatprep.subr.bf16.mxu0 0
        %417 = vmatpush1.bf16.msra.mxu0 0
        %418 = vmatprep.subr.bf16.mxu0 0
        %419 = vmatpush1.bf16.msra.mxu0 0
        %420 = vmatprep.subr.bf16.mxu0 0
        %421 = vmatpush1.bf16.msra.mxu0 0
        %422 = vmatprep.subr.bf16.mxu0 0
        %423 = vmatpush1.bf16.msra.mxu0 0
        %424 = vmatprep.subr.bf16.mxu0 0
        %425 = vmatpush1.bf16.msra.mxu0 0
        %426 = vmatprep.mubr.bf16.mxu0 0
        %427 = vmatmul.mubr.bf16.gmra.mrb[0].mxu0 %v385
        %v428 = vpop.f32.mrb[0].mxu0
        %v429 = vadd.f32 %v346, %v428
        %v430 = vpop.f32.mrb[0].mxu0
        %v431 = vadd.f32 %v346, %v430
        %v432 = vpop.f32.mrb[0].mxu0
        %v433 = vadd.f32 %v351, %v432
        %v434 = vpop.f32.mrb[0].mxu0
        %v435 = vadd.f32 %v351, %v434
        %436 = vdwg.mxu0
        %s437 = sld [smem:[#allocation2]]
        %vm438 = vcmp.ge.f32.partialorder %v429, 0.0
        %vm439 = vcmp.ge.f32.partialorder %v431, 0.0
        %vm440 = vcmp.ge.f32.partialorder %v433, 0.0
        %vm441 = vcmp.ge.f32.partialorder %v435, 0.0
        %v442 = vstv %s437
        %v443 = vmul.f32 %v442, %v429
        %v444 = vmul.f32 %v442, %v431
        %v445 = vmul.f32 %v442, %v433
        %v446 = vmul.f32 %v442, %v435
        %v447 = vsel %vm438, %v429, %v443
        %v448 = vsel %vm439, %v431, %v444
        %v449 = vsel %vm440, %v433, %v445
        %v450 = vsel %vm441, %v435, %v446
        %v451 = vld [vmem:[%s302] sm:$0xff]
        %v452 = vld [vmem:[%s302 + $0x8] sm:$0xff]
        %v453 = vunpack.c.l.bf16 %v451
        %v454 = vunpack.c.h.bf16 %v451
        %v455 = vunpack.c.l.bf16 %v452
        %v456 = vunpack.c.h.bf16 %v452
        %v457 = vadd.f32 %v447, %v453
        %v458 = vadd.f32 %v448, %v454
        %v459 = vadd.f32 %v449, %v455
        %v460 = vadd.f32 %v450, %v456
        %461 = vst [vmem:[%s329] sm:$0xff] %v457
        %462 = vst [vmem:[%s329 + $0x8] sm:$0xff] %v458
        %463 = vst [vmem:[%s329 + $0x10] sm:$0xff] %v459
        %464 = vst [vmem:[%s329 + $0x18] sm:$0xff] %v460
        %s465 = sand.u32 %s140, 1
        %s466 = sand.u32 %s140, 1
        %s467 = smul.addr %s466, 32
        %s468 = scalar_lea.vmem [#allocation5], %s467
        // Predicated region
        $region117: #{deep_up_projection_block.7} parent=107 // pred_check
          %p469 = pneg %p150
        $region118: #{deep_up_projection_block.7} parent=107 // pred_check_branch
          %471 = sbr.rel (%p469) target = $region120
        $region119: #{deep_up_projection_block.7} parent=107 // pred_region
          %s472 = smul.u32 2, %s17
          %s473 = smul.addr %s472, 8
          %s474 = scalar_lea.vmem %s5, %s473
          // Predicated region
          $region121: #{deep_up_projection_block.7} parent=119 // pred_check
            _
          $region122: #{deep_up_projection_block.7} parent=119 // pred_check_branch
            %476 = sbr.rel (0) target = $region124
          $region123: #{deep_up_projection_block.7} parent=119 // pred_region
            // Predicated region
            $region125: #{deep_up_projection_block.7} parent=123 // pred_check
              _
            $region126: #{deep_up_projection_block.7} parent=123 // pred_check_branch
              %478 = sbr.rel (0) target = $region128
            $region127: #{deep_up_projection_block.7} parent=123 // pred_region
              loop: start=0, step=1, limit=1
              $region129: #{deep_up_projection_block.7} parent=127 // loop_pre_header
                _
              $region130: #{deep_up_projection_block.7} parent=127 // loop_header
                %s480 = sphi 0, %s484
                %p481 = scmp.ge.s32.totalorder %s480, 1
                %s485 = sphi %s468, %s468
                %s486 = sphi %s474, %s474
              $region131: #{deep_up_projection_block.7} parent=127 // loop_header_branch
                %483 = sbr.rel (%p481) target = $region135
              $region132: #{deep_up_projection_block.7} parent=127 // loop_body
                %v487 = vld [vmem:[%s485] sm:$0xff]
                %488 = vst [vmem:[%s486] sm:$0xff] %v487
                %v489 = vld [vmem:[%s485 + $0x8] sm:$0xff]
                %490 = vst [vmem:[%s486 + $0x8] sm:$0xff] %v489
                %v491 = vld [vmem:[%s485 + $0x10] sm:$0xff]
                %492 = vst [vmem:[%s486 + $0x20] sm:$0xff] %v491
                %v493 = vld [vmem:[%s485 + $0x18] sm:$0xff]
                %494 = vst [vmem:[%s486 + $0x28] sm:$0xff] %v493
              $region133: #{deep_up_projection_block.7} parent=127 // loop_footer
                %s484 = sadd.s32 1, %s480
              $region134: #{deep_up_projection_block.7} parent=127 // loop_footer_branch
                %479 = sbr.rel target = $region130
              $region135: #{deep_up_projection_block.7} parent=127 // loop_exit
                _
            $region128: #{deep_up_projection_block.7} parent=123 // pred_fallthru
              _
            // Predicated region
            $region136: #{deep_up_projection_block.7} parent=123 // pred_check
              _
            $region137: #{deep_up_projection_block.7} parent=123 // pred_check_branch
              %496 = sbr.rel target = $region139
            $region138: #{deep_up_projection_block.7} parent=123 // pred_region
              _
            $region139: #{deep_up_projection_block.7} parent=123 // pred_fallthru
              _
          $region124: #{deep_up_projection_block.7} parent=119 // pred_fallthru
            _
          %497 = vnop
        $region120: #{deep_up_projection_block.7} parent=107 // pred_fallthru
          _
      $region108: #{deep_up_projection_block.7} parent=5 // pred_fallthru
        _
      %p498 = scmp.le.s32.totalorder 2, %s12
      // Predicated region
      $region140: #{deep_up_projection_block.7} parent=5 // pred_check
        %p499 = pneg %p498
      $region141: #{deep_up_projection_block.7} parent=5 // pred_check_branch
        %501 = sbr.rel (%p499) target = $region143
      $region142: #{deep_up_projection_block.7} parent=5 // pred_region
        %s502 = ssub.s32 %s12, 2
        // Predicated region
        $region144: #{deep_up_projection_block.7} parent=142 // pred_check
          %p503 = pneg %p156
        $region145: #{deep_up_projection_block.7} parent=142 // pred_check_branch
          %505 = sbr.rel (%p503) target = $region147
        $region146: #{deep_up_projection_block.7} parent=142 // pred_region
          %s506 = sand.u32 %s141, 1
          %s507 = sand.u32 %s141, 1
          %s508 = smul.addr %s507, 32
          %s509 = scalar_lea.vmem [#allocation5], %s508
        $region147: #{deep_up_projection_block.7} parent=142 // pred_fallthru
          _
      $region143: #{deep_up_projection_block.7} parent=5 // pred_fallthru
        _
    $region6: #{deep_up_projection_block.7} parent=1 // loop_footer
      %s16 = sadd.s32 1, %s12
    $region7: #{deep_up_projection_block.7} parent=1 // loop_footer_branch
      %11 = sbr.rel target = $region3
    $region8: #{deep_up_projection_block.7} parent=1 // loop_exit
      _

// kernel: deep_up_projection_block.6
$region0: #{deep_up_projection_block.6}
  #allocation0 [shape = 'u32[]', space=smem, size = 0x4, offset = 0x4, fixed_abs, tag = 'smem constant byte address 0x4 - core index']
  #allocation1 [shape = 'u32[144,128]{1,0:T(1,128)}', space=vmem, size = 0x12000, scoped, tag = 'internal scratch']
  #allocation2 [shape = 'f32[1]{0:T(128)S(6)}', space=smem, size = 0x200, scoped, tag = 'scoped memory for deep_up_projection_block.6']
  %s0 = inlined_call_operand.<no memory space> [shape: f32[1], index: 0, kind: input, shape index: {}]
  %s1 = inlined_call_operand.vmem [shape: bf16[4,144], index: 1, kind: input, shape index: {}]
  %s2 = inlined_call_operand.vmem [shape: bf16[144,512], index: 2, kind: input, shape index: {}]
  %s3 = inlined_call_operand.vmem [shape: f32[4,1], index: 3, kind: input, shape index: {}]
  %s4 = inlined_call_operand.vmem [shape: bf16[4,512], index: 4, kind: input, shape index: {}]
  %s5 = inlined_call_operand.vmem [shape: bf16[4,512], index: 5, kind: output, shape index: {}]
  %s6 = sld [smem:[#allocation0]]
  $region91: #{deep_up_projection_block.6} parent=0
    _
  %s8 = ssub.s32 1, %s6
  %s9 = scalar_select 0, %s8, %s6
  %10 = sst [smem:[#allocation2]] %s0
  $region1: #{deep_up_projection_block.6} parent=0
    #allocation3 [shape = 'u8[147456]{0}', space=vmem, size = 0x24000, scoped, tag = 'input window, operand 2']
    loop: start=0, step=1, limit=4
    $region2: #{deep_up_projection_block.6} parent=1 // loop_pre_header
      _
    $region3: #{deep_up_projection_block.6} parent=1 // loop_header
      %s12 = sphi 0, %s16
      %p13 = scmp.ge.s32.totalorder %s12, 4
      %s20 = sphi 0, %s20
      %s22 = sphi 0, %s20
      %s23 = sphi 0, %s22
      %s37 = sphi 0, %s23
      %s41 = sphi 0, %s41
      %s43 = sphi 0, %s41
      %s44 = sphi 0, %s43
      %s58 = sphi 0, %s44
      %s64 = sphi 0, %s66
      %s67 = sphi 0, %s64
      %s68 = sphi 0, %s67
      %s84 = sphi 0, %s68
      %s88 = sphi 0, %s88
      %s90 = sphi 0, %s88
      %s91 = sphi 0, %s90
      %s105 = sphi 0, %s91
      %s111 = sphi 0, %s113
      %s114 = sphi 0, %s111
      %s115 = sphi 0, %s114
      %s131 = sphi 0, %s115
      %s137 = sphi 0, %s139
      %s140 = sphi 0, %s137
      %s141 = sphi 0, %s140
      %s157 = sphi 0, %s141
    $region4: #{deep_up_projection_block.6} parent=1 // loop_header_branch
      %15 = sbr.rel (%p13) target = $region8
    $region5: #{deep_up_projection_block.6} parent=1 // loop_body
      %s17 = ssub.s32 %s12, 1
      %s18 = ssub.s32 %s12, 2
      %s19 = sadd.s32 %s12, 1
      %s21 = sadd.s32 %s20, 1
      %p24 = scmp.eq.s32.totalorder %s12, 1
      %p25 = scmp.ne.s32.totalorder %s20, %s22
      %p26 = scmp.eq.s32.totalorder %s12, 0
      %p27 = por %p25, %p26
      %p28 = scmp.ne.s32.totalorder %s20, %s22
      %p29 = scmp.eq.s32.totalorder %s17, 1
      %p30 = por %p28, %p29
      %p31 = scmp.ne.s32.totalorder %s22, %s23
      %p32 = scmp.eq.s32.totalorder %s17, 0
      %p33 = por %p31, %p32
      %p34 = scmp.ne.s32.totalorder %s22, %s23
      %p35 = scmp.eq.s32.totalorder %s18, 1
      %p36 = por %p34, %p35
      %p38 = scmp.ne.s32.totalorder %s23, %s37
      %p39 = scmp.eq.s32.totalorder %s18, 0
      %p40 = por %p38, %p39
      %s42 = sadd.s32 %s41, 1
      %p45 = scmp.eq.s32.totalorder %s12, 1
      %p46 = scmp.ne.s32.totalorder %s41, %s43
      %p47 = scmp.eq.s32.totalorder %s12, 0
      %p48 = por %p46, %p47
      %p49 = scmp.ne.s32.totalorder %s41, %s43
      %p50 = scmp.eq.s32.totalorder %s17, 1
      %p51 = por %p49, %p50
      %p52 = scmp.ne.s32.totalorder %s43, %s44
      %p53 = scmp.eq.s32.totalorder %s17, 0
      %p54 = por %p52, %p53
      %p55 = scmp.ne.s32.totalorder %s43, %s44
      %p56 = scmp.eq.s32.totalorder %s18, 1
      %p57 = por %p55, %p56
      %p59 = scmp.ne.s32.totalorder %s44, %s58
      %p60 = scmp.eq.s32.totalorder %s18, 0
      %p61 = por %p59, %p60
      %s62 = ssub.s32 %s12, %s19
      %p63 = scmp.eq.s32.totalorder %s62, 0
      %s65 = sadd.s32 %s64, 1
      %s66 = scalar_select %p63, %s64, %s65
      %p69 = pneg %p63
      %p70 = scmp.eq.s32.totalorder %s12, 1
      %p71 = por %p69, %p70
      %p72 = scmp.ne.s32.totalorder %s64, %s67
      %p73 = scmp.eq.s32.totalorder %s12, 0
      %p74 = por %p72, %p73
      %p75 = scmp.ne.s32.totalorder %s64, %s67
      %p76 = scmp.eq.s32.totalorder %s17, 1
      %p77 = por %p75, %p76
      %p78 = scmp.ne.s32.totalorder %s67, %s68
      %p79 = scmp.eq.s32.totalorder %s17, 0
      %p80 = por %p78, %p79
      %p81 = scmp.ne.s32.totalorder %s67, %s68
      %p82 = scmp.eq.s32.totalorder %s18, 1
      %p83 = por %p81, %p82
      %p85 = scmp.ne.s32.totalorder %s68, %s84
      %p86 = scmp.eq.s32.totalorder %s18, 0
      %p87 = por %p85, %p86
      %s89 = sadd.s32 %s88, 1
      %p92 = scmp.eq.s32.totalorder %s12, 1
      %p93 = scmp.ne.s32.totalorder %s88, %s90
      %p94 = scmp.eq.s32.totalorder %s12, 0
      %p95 = por %p93, %p94
      %p96 = scmp.ne.s32.totalorder %s88, %s90
      %p97 = scmp.eq.s32.totalorder %s17, 1
      %p98 = por %p96, %p97
      %p99 = scmp.ne.s32.totalorder %s90, %s91
      %p100 = scmp.eq.s32.totalorder %s17, 0
      %p101 = por %p99, %p100
      %p102 = scmp.ne.s32.totalorder %s90, %s91
      %p103 = scmp.eq.s32.totalorder %s18, 1
      %p104 = por %p102, %p103
      %p106 = scmp.ne.s32.totalorder %s91, %s105
      %p107 = scmp.eq.s32.totalorder %s18, 0
      %p108 = por %p106, %p107
      %s109 = ssub.s32 %s12, %s19
      %p110 = scmp.eq.s32.totalorder %s109, 0
      %s112 = sadd.s32 %s111, 1
      %s113 = scalar_select %p110, %s111, %s112
      %p116 = pneg %p110
      %p117 = scmp.eq.s32.totalorder %s12, 1
      %p118 = por %p116, %p117
      %p119 = scmp.ne.s32.totalorder %s111, %s114
      %p120 = scmp.eq.s32.totalorder %s12, 0
      %p121 = por %p119, %p120
      %p122 = scmp.ne.s32.totalorder %s111, %s114
      %p123 = scmp.eq.s32.totalorder %s17, 1
      %p124 = por %p122, %p123
      %p125 = scmp.ne.s32.totalorder %s114, %s115
      %p126 = scmp.eq.s32.totalorder %s17, 0
      %p127 = por %p125, %p126
      %p128 = scmp.ne.s32.totalorder %s114, %s115
      %p129 = scmp.eq.s32.totalorder %s18, 1
      %p130 = por %p128, %p129
      %p132 = scmp.ne.s32.totalorder %s115, %s131
      %p133 = scmp.eq.s32.totalorder %s18, 0
      %p134 = por %p132, %p133
      %s135 = ssub.s32 %s12, %s19
      %p136 = scmp.eq.s32.totalorder %s135, 0
      %s138 = sadd.s32 %s137, 1
      %s139 = scalar_select %p136, %s137, %s138
      %p142 = pneg %p136
      %p143 = scmp.eq.s32.totalorder %s12, 1
      %p144 = por %p142, %p143
      %p145 = scmp.ne.s32.totalorder %s137, %s140
      %p146 = scmp.eq.s32.totalorder %s12, 0
      %p147 = por %p145, %p146
      %p148 = scmp.ne.s32.totalorder %s137, %s140
      %p149 = scmp.eq.s32.totalorder %s17, 1
      %p150 = por %p148, %p149
      %p151 = scmp.ne.s32.totalorder %s140, %s141
      %p152 = scmp.eq.s32.totalorder %s17, 0
      %p153 = por %p151, %p152
      %p154 = scmp.ne.s32.totalorder %s140, %s141
      %p155 = scmp.eq.s32.totalorder %s18, 1
      %p156 = por %p154, %p155
      %p158 = scmp.ne.s32.totalorder %s141, %s157
      %p159 = scmp.eq.s32.totalorder %s18, 0
      %p160 = por %p158, %p159
      %p161 = scmp.le.s32.totalorder 1, %s12
      %p162 = scmp.lt.s32.totalorder %s12, 3
      %p163 = pnand %p161, %p162
      %p164 = pneg %p163
      // Predicated region
      $region9: #{deep_up_projection_block.6} parent=5 // pred_check
        _
      $region10: #{deep_up_projection_block.6} parent=5 // pred_check_branch
        %166 = sbr.rel (%p163) target = $region12
      $region11: #{deep_up_projection_block.6} parent=5 // pred_region
        %s167 = ssub.s32 %s12, 1
        // Predicated region
        $region13: #{deep_up_projection_block.6} parent=11 // pred_check
          %p168 = pneg %p33
        $region14: #{deep_up_projection_block.6} parent=11 // pred_check_branch
          %170 = sbr.rel (%p168) target = $region16
        $region15: #{deep_up_projection_block.6} parent=11 // pred_region
          _
        $region16: #{deep_up_projection_block.6} parent=11 // pred_fallthru
          _
        // Predicated region
        $region17: #{deep_up_projection_block.6} parent=11 // pred_check
          %p171 = pneg %p54
        $region18: #{deep_up_projection_block.6} parent=11 // pred_check_branch
          %173 = sbr.rel (%p171) target = $region20
        $region19: #{deep_up_projection_block.6} parent=11 // pred_region
          _
        $region20: #{deep_up_projection_block.6} parent=11 // pred_fallthru
          _
        // Predicated region
        $region21: #{deep_up_projection_block.6} parent=11 // pred_check
          %p174 = pneg %p101
        $region22: #{deep_up_projection_block.6} parent=11 // pred_check_branch
          %176 = sbr.rel (%p174) target = $region24
        $region23: #{deep_up_projection_block.6} parent=11 // pred_region
          _
        $region24: #{deep_up_projection_block.6} parent=11 // pred_fallthru
          _
      $region12: #{deep_up_projection_block.6} parent=5 // pred_fallthru
        _
      %p177 = scmp.lt.s32.totalorder %s12, 2
      // Predicated region
      $region25: #{deep_up_projection_block.6} parent=5 // pred_check
        %p178 = pneg %p177
      $region26: #{deep_up_projection_block.6} parent=5 // pred_check_branch
        %180 = sbr.rel (%p178) target = $region28
      $region27: #{deep_up_projection_block.6} parent=5 // pred_region
        // Predicated region
        $region29: #{deep_up_projection_block.6} parent=27 // pred_check
          %p181 = pneg %p74
        $region30: #{deep_up_projection_block.6} parent=27 // pred_check_branch
          %183 = sbr.rel (%p181) target = $region32
        $region31: #{deep_up_projection_block.6} parent=27 // pred_region
          %s184 = sand.u32 %s64, 1
          %s185 = sand.u32 %s64, 1
          %s186 = smul.addr %s185, 144
          %s187 = scalar_lea.vmem [#allocation3], %s186
          %s188 = smul.u32 2, %s12
          %s189 = smul.addr %s188, 4
          %s190 = scalar_lea.vmem %s2, %s189
          // Predicated region
          $region33: #{deep_up_projection_block.6} parent=31 // pred_check
            _
          $region34: #{deep_up_projection_block.6} parent=31 // pred_check_branch
            %192 = sbr.rel (0) target = $region36
          $region35: #{deep_up_projection_block.6} parent=31 // pred_region
            // Predicated region
            $region37: #{deep_up_projection_block.6} parent=35 // pred_check
              _
            $region38: #{deep_up_projection_block.6} parent=35 // pred_check_branch
              %194 = sbr.rel (0) target = $region40
            $region39: #{deep_up_projection_block.6} parent=35 // pred_region
              // Predicated region
              $region52: #{deep_up_projection_block.6} parent=39 // pred_check
                _
              $region53: #{deep_up_projection_block.6} parent=39 // pred_check_branch
                %243 = sbr.rel (0) target = $region55
              $region54: #{deep_up_projection_block.6} parent=39 // pred_region
                loop: start=0, step=1, limit=1
                $region56: #{deep_up_projection_block.6} parent=54 // loop_pre_header
                  _
                $region57: #{deep_up_projection_block.6} parent=54 // loop_header
                  %s245 = sphi 0, %s249
                  %p246 = scmp.ge.s32.totalorder %s245, 1
                  %s250 = sphi %s190, %s190
                  %s251 = sphi %s187, %s187
                $region58: #{deep_up_projection_block.6} parent=54 // loop_header_branch
                  %248 = sbr.rel (%p246) target = $region62
                $region59: #{deep_up_projection_block.6} parent=54 // loop_body
                  %v252 = vld [vmem:[%s250] sm:$0xff]
                  %253 = vst [vmem:[%s251] sm:$0xff] %v252
                  %v254 = vld [vmem:[%s250 + $0x10] sm:$0xff]
                  %255 = vst [vmem:[%s251 + $0x8] sm:$0xff] %v254
                  %v256 = vld [vmem:[%s250 + $0x20] sm:$0xff]
                  %257 = vst [vmem:[%s251 + $0x10] sm:$0xff] %v256
                  %v258 = vld [vmem:[%s250 + $0x30] sm:$0xff]
                  %259 = vst [vmem:[%s251 + $0x18] sm:$0xff] %v258
                  %v260 = vld [vmem:[%s250 + $0x40] sm:$0xff]
                  %261 = vst [vmem:[%s251 + $0x20] sm:$0xff] %v260
                  %v262 = vld [vmem:[%s250 + $0x50] sm:$0xff]
                  %263 = vst [vmem:[%s251 + $0x28] sm:$0xff] %v262
                  %v264 = vld [vmem:[%s250 + $0x60] sm:$0xff]
                  %265 = vst [vmem:[%s251 + $0x30] sm:$0xff] %v264
                  %v266 = vld [vmem:[%s250 + $0x70] sm:$0xff]
                  %267 = vst [vmem:[%s251 + $0x38] sm:$0xff] %v266
                  %v268 = vld [vmem:[%s250 + $0x80] sm:$0xff]
                  %269 = vst [vmem:[%s251 + $0x40] sm:$0xff] %v268
                  %v270 = vld [vmem:[%s250 + $0x90] sm:$0xff]
                  %271 = vst [vmem:[%s251 + $0x48] sm:$0xff] %v270
                  %v272 = vld [vmem:[%s250 + $0xa0] sm:$0xff]
                  %273 = vst [vmem:[%s251 + $0x50] sm:$0xff] %v272
                  %v274 = vld [vmem:[%s250 + $0xb0] sm:$0xff]
                  %275 = vst [vmem:[%s251 + $0x58] sm:$0xff] %v274
                  %v276 = vld [vmem:[%s250 + $0xc0] sm:$0xff]
                  %277 = vst [vmem:[%s251 + $0x60] sm:$0xff] %v276
                  %v278 = vld [vmem:[%s250 + $0xd0] sm:$0xff]
                  %279 = vst [vmem:[%s251 + $0x68] sm:$0xff] %v278
                  %v280 = vld [vmem:[%s250 + $0xe0] sm:$0xff]
                  %281 = vst [vmem:[%s251 + $0x70] sm:$0xff] %v280
                  %v282 = vld [vmem:[%s250 + $0xf0] sm:$0xff]
                  %283 = vst [vmem:[%s251 + $0x78] sm:$0xff] %v282
                  %v284 = vld [vmem:[%s250 + $0x100] sm:$0xff]
                  %285 = vst [vmem:[%s251 + $0x80] sm:$0xff] %v284
                  %v286 = vld [vmem:[%s250 + $0x110] sm:$0xff]
                  %287 = vst [vmem:[%s251 + $0x88] sm:$0xff] %v286
                $region60: #{deep_up_projection_block.6} parent=54 // loop_footer
                  %s249 = sadd.s32 1, %s245
                $region61: #{deep_up_projection_block.6} parent=54 // loop_footer_branch
                  %244 = sbr.rel target = $region57
                $region62: #{deep_up_projection_block.6} parent=54 // loop_exit
                  _
              $region55: #{deep_up_projection_block.6} parent=39 // pred_fallthru
                _
              // Predicated region
              $region63: #{deep_up_projection_block.6} parent=39 // pred_check
                _
              $region64: #{deep_up_projection_block.6} parent=39 // pred_check_branch
                %289 = sbr.rel target = $region66
              $region65: #{deep_up_projection_block.6} parent=39 // pred_region
                _
              $region66: #{deep_up_projection_block.6} parent=39 // pred_fallthru
                _
            $region40: #{deep_up_projection_block.6} parent=35 // pred_fallthru
              _
            // Predicated region
            $region41: #{deep_up_projection_block.6} parent=35 // pred_check
              _
            $region42: #{deep_up_projection_block.6} parent=35 // pred_check_branch
              %196 = sbr.rel target = $region44
            $region43: #{deep_up_projection_block.6} parent=35 // pred_region
              loop: start=0, step=1, limit=1
              $region45: #{deep_up_projection_block.6} parent=43 // loop_pre_header
                _
              $region46: #{deep_up_projection_block.6} parent=43 // loop_header
                %s199 = sphi 0, %s203
                %p200 = scmp.ge.s32.totalorder %s199, 1
                %s204 = sphi %s190, %s190
                %s205 = sphi %s187, %s187
              $region47: #{deep_up_projection_block.6} parent=43 // loop_header_branch
                %202 = sbr.rel (%p200) target = $region51
              $region48: #{deep_up_projection_block.6} parent=43 // loop_body
                %v206 = vld [vmem:[%s204] sm:$0xff]
                %207 = vst [vmem:[%s205] sm:$0xff] %v206
                %v208 = vld [vmem:[%s204 + $0x10] sm:$0xff]
                %209 = vst [vmem:[%s205 + $0x8] sm:$0xff] %v208
                %v210 = vld [vmem:[%s204 + $0x20] sm:$0xff]
                %211 = vst [vmem:[%s205 + $0x10] sm:$0xff] %v210
                %v212 = vld [vmem:[%s204 + $0x30] sm:$0xff]
                %213 = vst [vmem:[%s205 + $0x18] sm:$0xff] %v212
                %v214 = vld [vmem:[%s204 + $0x40] sm:$0xff]
                %215 = vst [vmem:[%s205 + $0x20] sm:$0xff] %v214
                %v216 = vld [vmem:[%s204 + $0x50] sm:$0xff]
                %217 = vst [vmem:[%s205 + $0x28] sm:$0xff] %v216
                %v218 = vld [vmem:[%s204 + $0x60] sm:$0xff]
                %219 = vst [vmem:[%s205 + $0x30] sm:$0xff] %v218
                %v220 = vld [vmem:[%s204 + $0x70] sm:$0xff]
                %221 = vst [vmem:[%s205 + $0x38] sm:$0xff] %v220
                %v222 = vld [vmem:[%s204 + $0x80] sm:$0xff]
                %223 = vst [vmem:[%s205 + $0x40] sm:$0xff] %v222
                %v224 = vld [vmem:[%s204 + $0x90] sm:$0xff]
                %225 = vst [vmem:[%s205 + $0x48] sm:$0xff] %v224
                %v226 = vld [vmem:[%s204 + $0xa0] sm:$0xff]
                %227 = vst [vmem:[%s205 + $0x50] sm:$0xff] %v226
                %v228 = vld [vmem:[%s204 + $0xb0] sm:$0xff]
                %229 = vst [vmem:[%s205 + $0x58] sm:$0xff] %v228
                %v230 = vld [vmem:[%s204 + $0xc0] sm:$0xff]
                %231 = vst [vmem:[%s205 + $0x60] sm:$0xff] %v230
                %v232 = vld [vmem:[%s204 + $0xd0] sm:$0xff]
                %233 = vst [vmem:[%s205 + $0x68] sm:$0xff] %v232
                %v234 = vld [vmem:[%s204 + $0xe0] sm:$0xff]
                %235 = vst [vmem:[%s205 + $0x70] sm:$0xff] %v234
                %v236 = vld [vmem:[%s204 + $0xf0] sm:$0xff]
                %237 = vst [vmem:[%s205 + $0x78] sm:$0xff] %v236
                %v238 = vld [vmem:[%s204 + $0x100] sm:$0xff]
                %239 = vst [vmem:[%s205 + $0x80] sm:$0xff] %v238
                %v240 = vld [vmem:[%s204 + $0x110] sm:$0xff]
                %241 = vst [vmem:[%s205 + $0x88] sm:$0xff] %v240
              $region49: #{deep_up_projection_block.6} parent=43 // loop_footer
                %s203 = sadd.s32 1, %s199
              $region50: #{deep_up_projection_block.6} parent=43 // loop_footer_branch
                %198 = sbr.rel target = $region46
              $region51: #{deep_up_projection_block.6} parent=43 // loop_exit
                _
            $region44: #{deep_up_projection_block.6} parent=35 // pred_fallthru
              _
          $region36: #{deep_up_projection_block.6} parent=31 // pred_fallthru
            _
          %290 = vnop
        $region32: #{deep_up_projection_block.6} parent=27 // pred_fallthru
          _
        // Predicated region
        $region67: #{deep_up_projection_block.6} parent=27 // pred_check
          %p291 = pneg %p121
        $region68: #{deep_up_projection_block.6} parent=27 // pred_check_branch
          %293 = sbr.rel (%p291) target = $region70
        $region69: #{deep_up_projection_block.6} parent=27 // pred_region
          %s294 = smul.u32 2, %s12
          %p295 = scmp.lt.s32.totalorder %s294, 3
          %s296 = scalar_select %p295, %s294, 3
          %s297 = smul.addr %s296, 2
          %s298 = scalar_lea.vmem %s4, %s297
          %s299 = smul.u32 2, %s12
        $region70: #{deep_up_projection_block.6} parent=27 // pred_fallthru
          _
      $region28: #{deep_up_projection_block.6} parent=5 // pred_fallthru
        _
      %p300 = scmp.le.s32.totalorder 1, %s12
      %p301 = scmp.lt.s32.totalorder %s12, 3
      %p302 = pnand %p300, %p301
      %p303 = pneg %p302
      // Predicated region
      $region71: #{deep_up_projection_block.6} parent=5 // pred_check
        _
      $region72: #{deep_up_projection_block.6} parent=5 // pred_check_branch
        %305 = sbr.rel (%p302) target = $region74
      $region73: #{deep_up_projection_block.6} parent=5 // pred_region
        %s306 = ssub.s32 %s12, 1
        %s307 = sand.u32 %s67, 1
        %s308 = sand.u32 %s67, 1
        %s309 = smul.addr %s308, 144
        %s310 = scalar_lea.vmem [#allocation3], %s309
        // Predicated region
        $region75: #{deep_up_projection_block.6} parent=73 // pred_check
          %p311 = pneg %p80
        $region76: #{deep_up_projection_block.6} parent=73 // pred_check_branch
          %313 = sbr.rel (%p311) target = $region78
        $region77: #{deep_up_projection_block.6} parent=73 // pred_region
          _
        $region78: #{deep_up_projection_block.6} parent=73 // pred_fallthru
          _
        %p314 = pneg %p33
        %p315 = pneg %p30
        %p316 = pneg %p54
        %p317 = pneg %p51
        %s318 = sand.u32 %s67, 1
        %s319 = sand.u32 %s67, 1
        %s320 = smul.addr %s319, 144
        %s321 = scalar_lea.vmem [#allocation3], %s320
        %p322 = pneg %p80
        %p323 = pneg %p77
        %p324 = pneg %p101
        %p325 = pneg %p98
        %s326 = smul.u32 2, %s17
        %p327 = scmp.lt.s32.totalorder %s326, 3
        %s328 = scalar_select %p327, %s326, 3
        %s329 = smul.addr %s328, 2
        %s330 = scalar_lea.vmem %s4, %s329
        %p331 = pneg %p127
        %p332 = pneg %p124
        %p333 = pneg %p153
        %p334 = pneg %p150
        %s335 = smul.u32 2, %s17
        %p336 = scmp.lt.s32.totalorder %s335, 3
        %s337 = scalar_select %p336, %s335, 3
        %s338 = smul.addr %s337, 2
        %s339 = scalar_lea.vmem %s5, %s338
        %s340 = smul.u32 2, %s17
        %s341 = smul.u32 2, %s17
        %p342 = scmp.lt.s32.totalorder %s341, 3
        %s343 = scalar_select %p342, %s341, 3
        %s344 = smul.addr %s343, 2
        %s345 = scalar_lea.vmem %s4, %s344
        %s346 = smul.u32 2, %s17
        %s347 = smul.u32 2, %s17
        %p348 = scmp.lt.s32.totalorder %s347, 3
        %s349 = scalar_select %p348, %s347, 3
        %s350 = smul.addr %s349, 2
        %s351 = scalar_lea.vmem %s5, %s350
        %s352 = smul.u32 2, %s17
        %v354 = vld [vmem:[%s1] sm:$0xf]
        %v355 = vld [vmem:[%s310] sm:$0xff]
        %v356 = vld [vmem:[%s310 + $0x8] sm:$0xff]
        %v357 = vld [vmem:[%s310 + $0x10] sm:$0xff]
        %v358 = vld [vmem:[%s310 + $0x18] sm:$0xff]
        %v359 = vld [vmem:[%s310 + $0x20] sm:$0xff]
        %v360 = vld [vmem:[%s310 + $0x28] sm:$0xff]
        %v361 = vld [vmem:[%s310 + $0x30] sm:$0xff]
        %v362 = vld [vmem:[%s310 + $0x38] sm:$0xff]
        %v363 = vld [vmem:[%s310 + $0x40] sm:$0xff]
        %v364 = vld [vmem:[%s310 + $0x48] sm:$0xff]
        %v365 = vld [vmem:[%s310 + $0x50] sm:$0xff]
        %v366 = vld [vmem:[%s310 + $0x58] sm:$0xff]
        %v367 = vld [vmem:[%s310 + $0x60] sm:$0xff]
        %v368 = vld [vmem:[%s310 + $0x68] sm:$0xff]
        %v369 = vld [vmem:[%s310 + $0x70] sm:$0xff]
        %v370 = vld [vmem:[%s310 + $0x78] sm:$0xff]
        %v371 = vld [vmem:[%s310 + $0x80] sm:$0xff]
        %v372 = vld [vmem:[%s310 + $0x88] sm:$0xff]
        %v373 = vld [vmem:[%s3] sm:$0xf]
        %375 = vset.pattern.permute.xlu0 0
        %376 = vperm.xlu0 %375, %v373
        %v377 = vpop.permute.xlu0 %376
        %v381 = vunpack.c.l.s4 1983009808
        %v382 = vunpack.c.0.s8 %v381
        %v383 = vlaneseq
        %v384 = vshrl.u32 %v383, 7
        %v385 = vsub.s32 %v382, %v384
        %v386 = vrot.slane %v354, %v385
        %v387 = vcombine.high %v386, %v386
        %v407 = vunpack.c.l.b16 %v355
        %v408 = vunpack.c.h.b16 %v355
        %v409 = vunpack.c.l.b16 %v356
        %v410 = vunpack.c.h.b16 %v356
        %v411 = vunpack.c.l.b16 %v357
        %v412 = vunpack.c.h.b16 %v357
        %v413 = vunpack.c.l.b16 %v358
        %v414 = vunpack.c.h.b16 %v358
        %v415 = vunpack.c.l.b16 %v359
        %v416 = vunpack.c.h.b16 %v359
        %v417 = vunpack.c.l.b16 %v360
        %v418 = vunpack.c.h.b16 %v360
        %v419 = vunpack.c.l.b16 %v361
        %v420 = vunpack.c.h.b16 %v361
        %v421 = vunpack.c.l.b16 %v362
        %v422 = vunpack.c.h.b16 %v362
        %v423 = vunpack.c.l.b16 %v363
        %v424 = vunpack.c.h.b16 %v363
        %v425 = vunpack.c.l.b16 %v364
        %v426 = vunpack.c.h.b16 %v364
        %v427 = vunpack.c.l.b16 %v365
        %v428 = vunpack.c.h.b16 %v365
        %v429 = vunpack.c.l.b16 %v366
        %v430 = vunpack.c.h.b16 %v366
        %v431 = vunpack.c.l.b16 %v367
        %v432 = vunpack.c.h.b16 %v367
        %v433 = vunpack.c.l.b16 %v368
        %v434 = vunpack.c.h.b16 %v368
        %v435 = vunpack.c.l.b16 %v369
        %v436 = vunpack.c.h.b16 %v369
        %v437 = vunpack.c.l.b16 %v370
        %v438 = vunpack.c.h.b16 %v370
        %v439 = vunpack.c.l.b16 %v371
        %v440 = vunpack.c.h.b16 %v371
        %v441 = vunpack.c.l.b16 %v372
        %v442 = vunpack.c.h.b16 %v372
        %v443 = vpack.c.b16 %v409, %v407
        %v444 = vpack.c.b16 %v410, %v408
        %v445 = vpack.c.b16 %v413, %v411
        %v446 = vpack.c.b16 %v414, %v412
        %v447 = vpack.c.b16 %v417, %v415
        %v448 = vpack.c.b16 %v418, %v416
        %v449 = vpack.c.b16 %v421, %v419
        %v450 = vpack.c.b16 %v422, %v420
        %v451 = vpack.c.b16 %v425, %v423
        %v452 = vpack.c.b16 %v426, %v424
        %v453 = vpack.c.b16 %v429, %v427
        %v454 = vpack.c.b16 %v430, %v428
        %v455 = vpack.c.b16 %v433, %v431
        %v456 = vpack.c.b16 %v434, %v432
        %v457 = vpack.c.b16 %v437, %v435
        %v458 = vpack.c.b16 %v438, %v436
        %v459 = vpack.c.b16 %v441, %v439
        %v460 = vpack.c.b16 %v442, %v440
        %vm479 = vcmask 130048
        %v481 = vsel %vm479, %v387, 0
        %483 = vmatprep.subr.bf16.mxu0 %v444
        %484 = vmatpush1.bf16.msra.mxu0 %v443
        %485 = vmatprep.subr.bf16.mxu0 %v446
        %486 = vmatpush1.bf16.msra.mxu0 %v445
        %487 = vmatprep.subr.bf16.mxu0 %v448
        %488 = vmatpush1.bf16.msra.mxu0 %v447
        %489 = vmatprep.subr.bf16.mxu0 %v450
        %490 = vmatpush1.bf16.msra.mxu0 %v449
        %491 = vmatprep.subr.bf16.mxu0 %v452
        %492 = vmatpush1.bf16.msra.mxu0 %v451
        %493 = vmatprep.subr.bf16.mxu0 %v454
        %494 = vmatpush1.bf16.msra.mxu0 %v453
        %495 = vmatprep.subr.bf16.mxu0 %v456
        %496 = vmatpush1.bf16.msra.mxu0 %v455
        %497 = vmatprep.subr.bf16.mxu0 %v458
        %498 = vmatpush1.bf16.msra.mxu0 %v457
        %499 = vmatprep.subr.bf16.mxu0 %v460
        %500 = vmatpush1.bf16.msra.mxu0 %v459
        %501 = vmatprep.subr.bf16.mxu0 0
        %502 = vmatpush1.bf16.msra.mxu0 0
        %503 = vmatprep.subr.bf16.mxu0 0
        %504 = vmatpush1.bf16.msra.mxu0 0
        %505 = vmatprep.subr.bf16.mxu0 0
        %506 = vmatpush1.bf16.msra.mxu0 0
        %507 = vmatprep.subr.bf16.mxu0 0
        %508 = vmatpush1.bf16.msra.mxu0 0
        %509 = vmatprep.subr.bf16.mxu0 0
        %510 = vmatpush1.bf16.msra.mxu0 0
        %511 = vmatprep.subr.bf16.mxu0 0
        %512 = vmatpush1.bf16.msra.mxu0 0
        %513 = vmatprep.subr.bf16.mxu0 0
        %514 = vmatpush1.bf16.msra.mxu0 0
        %515 = vmatprep.mubr.bf16.mxu0 %v481
        %516 = vmatmul.mubr.bf16.gmra.mrb[0].mxu0 %v386
        %v517 = vpop.f32.mrb[0].mxu0
        %v518 = vadd.f32 %v377, %v517
        %v519 = vpop.f32.mrb[0].mxu0
        %v520 = vadd.f32 %v377, %v519
        %v521 = vpop.f32.mrb[0].mxu0
        %v522 = vpop.f32.mrb[0].mxu0
        %523 = vdwg.mxu0
        %s524 = sld [smem:[#allocation2]]
        %vm525 = vcmp.ge.f32.partialorder %v518, 0.0
        %vm526 = vcmp.ge.f32.partialorder %v520, 0.0
        %v527 = vstv %s524
        %v528 = vmul.f32 %v527, %v518
        %v529 = vmul.f32 %v527, %v520
        %v530 = vsel %vm525, %v518, %v528
        %v531 = vsel %vm526, %v520, %v529
        %v532 = vld [vmem:[%s345] sm:$0xf]
        %v533 = vunpack.c.l.bf16 %v532
        %v535 = vcombine.high %v533, %v533
        %v537 = vsub.f32 %v530, %v533
        %v538 = vsub.f32 %v531, %v535
        %v539 = vpack.c.bf16 %v537, %v537
        %v540 = vpack.c.bf16 %v538, %v538
        %v543 = vcombine.low %v539, %v540
        %v545 = vunpack.c.l.s4 1983009808
        %v546 = vunpack.c.0.s8 %v545
        %v547 = vlaneseq
        %v548 = vshrl.u32 %v547, 7
        %v549 = vsub.s32 %v546, %v548
        %v550 = vrot.slane %v543, %v549
        %552 = vst [vmem:[%s351] sm:$0xf] %v550
        %s553 = smul.u32 2, %s17
        %p554 = scmp.lt.s32.totalorder %s553, 3
        %s555 = scalar_select %p554, %s553, 3
        %s556 = smul.addr %s555, 2
        %s557 = scalar_lea.vmem %s5, %s556
        // Predicated region
        $region79: #{deep_up_projection_block.6} parent=73 // pred_check
          %p558 = pneg %p150
        $region80: #{deep_up_projection_block.6} parent=73 // pred_check_branch
          %560 = sbr.rel (%p558) target = $region82
        $region81: #{deep_up_projection_block.6} parent=73 // pred_region
          %s561 = smul.u32 2, %s17
        $region82: #{deep_up_projection_block.6} parent=73 // pred_fallthru
          _
      $region74: #{deep_up_projection_block.6} parent=5 // pred_fallthru
        _
      %p562 = scmp.le.s32.totalorder 2, %s12
      // Predicated region
      $region83: #{deep_up_projection_block.6} parent=5 // pred_check
        %p563 = pneg %p562
      $region84: #{deep_up_projection_block.6} parent=5 // pred_check_branch
        %565 = sbr.rel (%p563) target = $region86
      $region85: #{deep_up_projection_block.6} parent=5 // pred_region
        %s566 = ssub.s32 %s12, 2
        // Predicated region
        $region87: #{deep_up_projection_block.6} parent=85 // pred_check
          %p567 = pneg %p156
        $region88: #{deep_up_projection_block.6} parent=85 // pred_check_branch
          %569 = sbr.rel (%p567) target = $region90
        $region89: #{deep_up_projection_block.6} parent=85 // pred_region
          %s570 = smul.u32 2, %s18
          %p571 = scmp.lt.s32.totalorder %s570, 3
          %s572 = scalar_select %p571, %s570, 3
          %s573 = smul.addr %s572, 2
          %s574 = scalar_lea.vmem %s5, %s573
        $region90: #{deep_up_projection_block.6} parent=85 // pred_fallthru
          _
      $region86: #{deep_up_projection_block.6} parent=5 // pred_fallthru
        _
    $region6: #{deep_up_projection_block.6} parent=1 // loop_footer
      %s16 = sadd.s32 1, %s12
    $region7: #{deep_up_projection_block.6} parent=1 // loop_footer_branch
      %11 = sbr.rel target = $region3
    $region8: #{deep_up_projection_block.6} parent=1 // loop_exit
      _

</llo_original>
